<compile_context>
chip_gen: v7x
topology: tpu7x:2x2x1
jax: 0.10.0
libtpu: 0.0.40
codegen_flags: <defaults>
</compile_context>

<pallas_src>
import jax
import jax.numpy as jnp
from jax.experimental import pallas as pl
from jax.experimental.pallas import tpu as pltpu

IMG_FEATS = 28 * 28                 # 784
COND_FEATS = 10
IN_FEATS = IMG_FEATS + COND_FEATS   # 794
K_PAD = 896                         # 7 * 128 -> lane-aligned layer-1 K
H1 = 512
H2 = 256
OUT = 1


def _round_up(n, m):
    return ((n + m - 1) // m) * m


def _disc_kernel(x_ref, w1_ref, b1_ref, w2_ref, b2_ref, w3_ref, b3_ref, o_ref):
    """One batch tile: Linear+LeakyReLU x2 on the MXU, then lane-reduce + sigmoid."""
    # Layer 1: (TM, 896) @ (896, 512); bf16 operands, f32 accumulate.
    h = jnp.dot(x_ref[...], w1_ref[...], preferred_element_type=jnp.float32)
    h = h + b1_ref[...]                   # (TM, 512) + (1, 512)
    h = jnp.maximum(h, 0.2 * h)           # LeakyReLU(0.2), single VPU op

    # Layer 2: (TM, 512) @ (512, 256)
    h = jnp.dot(h.astype(jnp.bfloat16), w2_ref[...],
                preferred_element_type=jnp.float32)
    h = h + b2_ref[...]
    h = jnp.maximum(h, 0.2 * h)

    # Layer 3 (out_features=1): broadcast-multiply by the (1, 256) weight row and
    # reduce over lanes -- avoids wasting an MXU pass with N=1.
    logit = jnp.sum(h * w3_ref[...], axis=-1, keepdims=True) + b3_ref[...]
    o_ref[...] = jax.nn.sigmoid(logit).astype(o_ref.dtype)


def discriminator_forward(x, c, prepared_params, *, tile_m=256):
    """x: (B, 1, 28, 28) or (B, 784) f32; c: (B, 10) f32. Returns (B, 1) f32."""
    w1, b1, w2, b2, w3, b3 = prepared_params
    B = x.shape[0]
    x_flat = x.reshape(B, -1)                      # x.view(B, -1)
    xc = jnp.concatenate([x_flat, c], axis=-1)     # (B, 794)

    # Batch tile: >=256 for large batches, otherwise one full (8-aligned) tile.
    tm = min(tile_m, _round_up(B, 8))
    Bp = _round_up(B, tm)
    # Zero-pad rows (batch) and lanes (794 -> 896); cast the stream to bf16.
    xc = jnp.pad(xc, ((0, Bp - B), (0, K_PAD - IN_FEATS))).astype(jnp.bfloat16)

    grid = (Bp // tm,)
    cost = pl.CostEstimate(
        flops=2 * Bp * (K_PAD * H1 + H1 * H2 + H2),
        transcendentals=Bp,
        bytes_accessed=(xc.size * 2 + w1.size * 2 + w2.size * 2
                        + (b1.size + b2.size + w3.size + b3.size) * 4
                        + Bp * OUT * 4))

    out = pl.pallas_call(
        _disc_kernel,
        out_shape=jax.ShapeDtypeStruct((Bp, OUT), jnp.float32),
        grid_spec=pltpu.PrefetchScalarGridSpec(
            num_scalar_prefetch=0,
            grid=grid,
            in_specs=[
                pl.BlockSpec((tm, K_PAD), lambda i: (i, 0)),    # activation tiles stream
                pl.BlockSpec((K_PAD, H1), lambda i: (0, 0)),    # weights stay resident
                pl.BlockSpec((1, H1), lambda i: (0, 0)),
                pl.BlockSpec((H1, H2), lambda i: (0, 0)),
                pl.BlockSpec((1, H2), lambda i: (0, 0)),
                pl.BlockSpec((1, H2), lambda i: (0, 0)),        # w3 as a (1, 256) row
                pl.BlockSpec((1, 1), lambda i: (0, 0)),
            ],
            out_specs=pl.BlockSpec((tm, OUT), lambda i: (i, 0)),
        ),
        compiler_params=pltpu.CompilerParams(
            dimension_semantics=("parallel",)),
        cost_estimate=cost,
    )(xc, w1, b1, w2, b2, w3, b3)
    return out[:B]


def init_params(key):
    """nn.Linear-style init. Weights returned as (in, out) f32; biases (1, out)."""
    def linear(k, fan_in, fan_out):
        kw, kb = jax.random.split(k)
        bound = 1.0 / jnp.sqrt(fan_in)
        w = jax.random.uniform(kw, (fan_in, fan_out), jnp.float32, -bound, bound)
        b = jax.random.uniform(kb, (1, fan_out), jnp.float32, -bound, bound)
        return w, b

    k1, k2, k3 = jax.random.split(key, 3)
    w1, b1 = linear(k1, IN_FEATS, H1)
    w2, b2 = linear(k2, H1, H2)
    w3, b3 = linear(k3, H2, OUT)
    return (w1, b1, w2, b2, w3, b3)


def prepare_params(raw_params):
    """Kernel-ready params: w1 zero-padded to 896 rows, w1/w2 in bf16,
    w3 reshaped to a (1, 256) row (f32), b3 as (1, 1)."""
    w1, b1, w2, b2, w3, b3 = raw_params
    w1p = jnp.zeros((K_PAD, H1), jnp.float32).at[:IN_FEATS].set(w1)
    return (w1p.astype(jnp.bfloat16), b1,
            w2.astype(jnp.bfloat16), b2,
            w3.reshape(1, H2), b3.reshape(1, 1))


def _reference_forward_bf16(x, c, prepared_params):
    """Pure-JAX reference mirroring the kernel's bf16/f32 numerics."""
    w1, b1, w2, b2, w3, b3 = prepared_params
    B = x.shape[0]
    xc = jnp.concatenate([x.reshape(B, -1), c], axis=-1)
    xc = jnp.pad(xc, ((0, 0), (0, K_PAD - IN_FEATS))).astype(jnp.bfloat16)
    h = jnp.dot(xc, w1, preferred_element_type=jnp.float32) + b1
    h = jnp.maximum(h, 0.2 * h)
    h = jnp.dot(h.astype(jnp.bfloat16), w2, preferred_element_type=jnp.float32) + b2
    h = jnp.maximum(h, 0.2 * h)
    logit = jnp.sum(h * w3, axis=-1, keepdims=True) + b3
    return jax.nn.sigmoid(logit)


def _reference_forward_f32(x, c, raw_params):
    """Pure-f32 reference matching the original PyTorch module semantics."""
    w1, b1, w2, b2, w3, b3 = raw_params
    h = jnp.concatenate([x.reshape(x.shape[0], -1), c], axis=-1)
    h = h @ w1 + b1
    h = jnp.where(h > 0, h, 0.2 * h)
    h = h @ w2 + b2
    h = jnp.where(h > 0, h, 0.2 * h)
    h = h @ w3 + b3
    return jax.nn.sigmoid(h)


if __name__ == "__main__":
    key = jax.random.PRNGKey(0)
    kx, kc, kp = jax.random.split(key, 3)

    B = 8
    x = jax.random.normal(kx, (B, 1, 28, 28), jnp.float32)    # MNIST-shaped image
    labels = jax.random.randint(kc, (B,), 0, 10)
    c = jax.nn.one_hot(labels, 10, dtype=jnp.float32)         # one-hot condition

    raw_params = init_params(kp)
    params = prepare_params(raw_params)

    fwd = jax.jit(discriminator_forward)
    validity = fwd(x, c, params)
    jax.block_until_ready(validity)

    assert validity.shape == (B, 1)
    ref_bf16 = _reference_forward_bf16(x, c, params)
    assert jnp.allclose(validity, ref_bf16, atol=2e-3, rtol=2e-3), "bf16 ref mismatch"
    ref_f32 = _reference_forward_f32(x, c, raw_params)
    assert jnp.allclose(validity, ref_f32, atol=3e-2, rtol=3e-2), "f32 ref mismatch"

    print("KERNEL_OK")
</pallas_src>

<mosaic_0001>
module attributes {stable_mosaic.version = 11 : i64} {
  func.func @_disc_kernel(%arg0: i32, %arg1: memref<8x896xbf16, #tpu.memory_space<vmem>>, %arg2: memref<896x512xbf16, #tpu.memory_space<vmem>>, %arg3: memref<1x512xf32, #tpu.memory_space<vmem>>, %arg4: memref<512x256xbf16, #tpu.memory_space<vmem>>, %arg5: memref<1x256xf32, #tpu.memory_space<vmem>>, %arg6: memref<1x256xf32, #tpu.memory_space<vmem>>, %arg7: memref<1x1xf32, #tpu.memory_space<vmem>>, %arg8: memref<8x1xf32, #tpu.memory_space<vmem>>) attributes {dimension_semantics = [#tpu.dimension_semantics<parallel>], iteration_bounds = array<i64: 1>, scalar_prefetch = 0 : i64, scratch_operands = 0 : i64, tpu.core_type = #tpu.core_type<tc>, window_params = [{transform_indices = @transform_0, window_bounds = array<i64: 8, 896>}, {pipeline_mode = #tpu.pipeline_mode<synchronous>, transform_indices = @transform_1, window_bounds = array<i64: 896, 512>}, {pipeline_mode = #tpu.pipeline_mode<synchronous>, transform_indices = @transform_2, window_bounds = array<i64: 1, 512>}, {pipeline_mode = #tpu.pipeline_mode<synchronous>, transform_indices = @transform_3, window_bounds = array<i64: 512, 256>}, {pipeline_mode = #tpu.pipeline_mode<synchronous>, transform_indices = @transform_4, window_bounds = array<i64: 1, 256>}, {pipeline_mode = #tpu.pipeline_mode<synchronous>, transform_indices = @transform_5, window_bounds = array<i64: 1, 256>}, {pipeline_mode = #tpu.pipeline_mode<synchronous>, transform_indices = @transform_6, window_bounds = array<i64: 1, 1>}, {transform_indices = @transform_7, window_bounds = array<i64: 8, 1>}]} {
    %c0 = arith.constant 0 : index
    %c0_0 = arith.constant 0 : index
    %0 = vector.load %arg1[%c0, %c0_0] : memref<8x896xbf16, #tpu.memory_space<vmem>>, vector<8x896xbf16>
    %c0_1 = arith.constant 0 : index
    %c0_2 = arith.constant 0 : index
    %1 = vector.load %arg2[%c0_1, %c0_2] : memref<896x512xbf16, #tpu.memory_space<vmem>>, vector<896x512xbf16>
    %cst = arith.constant dense<0.000000e+00> : vector<8x512xf32>
    %2 = tpu.matmul %0, %1, %cst {dimension_numbers = #tpu.dot_dimension_numbers<[1], [0], [0], [1], [0, 0, 1, 1], [], []>} : vector<8x896xbf16>, vector<896x512xbf16>, vector<8x512xf32> -> vector<8x512xf32>
    %c0_3 = arith.constant 0 : index
    %c0_4 = arith.constant 0 : index
    %3 = vector.load %arg3[%c0_3, %c0_4] : memref<1x512xf32, #tpu.memory_space<vmem>>, vector<1x512xf32>
    %4 = vector.broadcast %3 : vector<1x512xf32> to vector<8x512xf32>
    %5 = arith.addf %2, %4 : vector<8x512xf32>
    %cst_5 = arith.constant 2.000000e-01 : f32
    %6 = vector.broadcast %cst_5 : f32 to vector<8x512xf32>
    %7 = arith.mulf %6, %5 : vector<8x512xf32>
    %8 = arith.maximumf %5, %7 : vector<8x512xf32>
    %9 = arith.truncf %8 : vector<8x512xf32> to vector<8x512xbf16>
    %c0_6 = arith.constant 0 : index
    %c0_7 = arith.constant 0 : index
    %10 = vector.load %arg4[%c0_6, %c0_7] : memref<512x256xbf16, #tpu.memory_space<vmem>>, vector<512x256xbf16>
    %cst_8 = arith.constant dense<0.000000e+00> : vector<8x256xf32>
    %11 = tpu.matmul %9, %10, %cst_8 {dimension_numbers = #tpu.dot_dimension_numbers<[1], [0], [0], [1], [0, 0, 1, 1], [], []>} : vector<8x512xbf16>, vector<512x256xbf16>, vector<8x256xf32> -> vector<8x256xf32>
    %c0_9 = arith.constant 0 : index
    %c0_10 = arith.constant 0 : index
    %12 = vector.load %arg5[%c0_9, %c0_10] : memref<1x256xf32, #tpu.memory_space<vmem>>, vector<1x256xf32>
    %13 = vector.broadcast %12 : vector<1x256xf32> to vector<8x256xf32>
    %14 = arith.addf %11, %13 : vector<8x256xf32>
    %cst_11 = arith.constant 2.000000e-01 : f32
    %15 = vector.broadcast %cst_11 : f32 to vector<8x256xf32>
    %16 = arith.mulf %15, %14 : vector<8x256xf32>
    %17 = arith.maximumf %14, %16 : vector<8x256xf32>
    %c0_12 = arith.constant 0 : index
    %c0_13 = arith.constant 0 : index
    %18 = vector.load %arg6[%c0_12, %c0_13] : memref<1x256xf32, #tpu.memory_space<vmem>>, vector<1x256xf32>
    %19 = vector.broadcast %18 : vector<1x256xf32> to vector<8x256xf32>
    %20 = arith.mulf %17, %19 : vector<8x256xf32>
    %cst_14 = arith.constant dense<0.000000e+00> : vector<8xf32>
    %21 = vector.multi_reduction <add>, %20, %cst_14 [1] : vector<8x256xf32> to vector<8xf32>
    %22 = vector.shape_cast %21 : vector<8xf32> to vector<8x1xf32>
    %c0_15 = arith.constant 0 : index
    %c0_16 = arith.constant 0 : index
    %23 = vector.load %arg7[%c0_15, %c0_16] : memref<1x1xf32, #tpu.memory_space<vmem>>, vector<1x1xf32>
    %24 = vector.broadcast %23 : vector<1x1xf32> to vector<8x1xf32>
    %25 = arith.addf %22, %24 : vector<8x1xf32>
    %26 = arith.negf %25 : vector<8x1xf32>
    %27 = math.exp %26 : vector<8x1xf32>
    %cst_17 = arith.constant 1.000000e+00 : f32
    %28 = vector.broadcast %cst_17 : f32 to vector<8x1xf32>
    %29 = arith.addf %28, %27 : vector<8x1xf32>
    %30 = arith.divf %28, %29 : vector<8x1xf32>
    %c0_18 = arith.constant 0 : index
    %c0_19 = arith.constant 0 : index
    %31 = vector.load %arg8[%c0_18, %c0_19] : memref<8x1xf32, #tpu.memory_space<vmem>>, vector<8x1xf32>
    tpu.vector_store %arg8[%c0_18, %c0_19], %30 {strides = array<i32>} : memref<8x1xf32, #tpu.memory_space<vmem>>, vector<8x1xf32>,
    return
  }
  func.func @transform_0(%arg0: i32) -> (i32, i32) {
    %c0_i32 = arith.constant 0 : i32
    %c0_i32_0 = arith.constant 0 : i32
    return %arg0, %c0_i32 : i32, i32
  }
  func.func @transform_1(%arg0: i32) -> (i32, i32) {
    %c0_i32 = arith.constant 0 : i32
    %c0_i32_0 = arith.constant 0 : i32
    %c0_i32_1 = arith.constant 0 : i32
    return %c0_i32, %c0_i32_0 : i32, i32
  }
  func.func @transform_2(%arg0: i32) -> (i32, i32) {
    %c0_i32 = arith.constant 0 : i32
    %c0_i32_0 = arith.constant 0 : i32
    %c0_i32_1 = arith.constant 0 : i32
    return %c0_i32, %c0_i32_0 : i32, i32
  }
  func.func @transform_3(%arg0: i32) -> (i32, i32) {
    %c0_i32 = arith.constant 0 : i32
    %c0_i32_0 = arith.constant 0 : i32
    %c0_i32_1 = arith.constant 0 : i32
    return %c0_i32, %c0_i32_0 : i32, i32
  }
  func.func @transform_4(%arg0: i32) -> (i32, i32) {
    %c0_i32 = arith.constant 0 : i32
    %c0_i32_0 = arith.constant 0 : i32
    %c0_i32_1 = arith.constant 0 : i32
    return %c0_i32, %c0_i32_0 : i32, i32
  }
  func.func @transform_5(%arg0: i32) -> (i32, i32) {
    %c0_i32 = arith.constant 0 : i32
    %c0_i32_0 = arith.constant 0 : i32
    %c0_i32_1 = arith.constant 0 : i32
    return %c0_i32, %c0_i32_0 : i32, i32
  }
  func.func @transform_6(%arg0: i32) -> (i32, i32) {
    %c0_i32 = arith.constant 0 : i32
    %c0_i32_0 = arith.constant 0 : i32
    %c0_i32_1 = arith.constant 0 : i32
    return %c0_i32, %c0_i32_0 : i32, i32
  }
  func.func @transform_7(%arg0: i32) -> (i32, i32) {
    %c0_i32 = arith.constant 0 : i32
    %c0_i32_0 = arith.constant 0 : i32
    return %arg0, %c0_i32 : i32, i32
  }
}

</mosaic_0001>

<llo_original>
// kernel: discriminator_forward.1
$region0: #{discriminator_forward.1}
  #allocation0 [shape = 'u32[]', space=smem, size = 0x4, offset = 0x4, fixed_abs, tag = 'smem constant byte address 0x4 - core index']
  #allocation1 [shape = 'u32[144,128]{1,0:T(1,128)}', space=vmem, size = 0x12000, scoped, tag = 'internal scratch']
  #allocation2 [shape = 'f32[1,1]{1,0:T(1,128)S(1)}', space=vmem, size = 0x200, scoped, tag = 'scoped memory for discriminator_forward.1']
  %s0 = inlined_call_operand.vmem [shape: bf16[8,896], index: 0, kind: input, shape index: {}]
  %s1 = inlined_call_operand.hbm [shape: bf16[896,512], index: 1, kind: input, shape index: {}]
  %s2 = inlined_call_operand.vmem [shape: f32[1,512], index: 2, kind: input, shape index: {}]
  %s3 = inlined_call_operand.vmem [shape: bf16[512,256], index: 3, kind: input, shape index: {}]
  %s4 = inlined_call_operand.vmem [shape: f32[1,256], index: 4, kind: input, shape index: {}]
  %s5 = inlined_call_operand.vmem [shape: f32[1,256], index: 5, kind: input, shape index: {}]
  %s6 = inlined_call_operand.<no memory space> [shape: f32[1,1], index: 6, kind: input, shape index: {}]
  %s7 = inlined_call_operand.vmem [shape: f32[8,1], index: 7, kind: output, shape index: {}]
  %s8 = sld [smem:[#allocation0]]
  $region42: #{discriminator_forward.1} parent=0
    _
  %s10 = ssub.s32 1, %s8
  %s11 = scalar_select 0, %s10, %s8
  %v12 = vstv %s6
  %13 = vst [vmem:[#allocation2] sm:$0x1] %v12
  $region1: #{discriminator_forward.1} parent=0
    #allocation3 [shape = 'u8[917504]{0}', space=vmem, size = 0xe0000, scoped, tag = 'input window, operand 1, single buffered']
    #allocation4 [shape = 's32[1]{0}', space=sflag, size = 0x4, scoped, tag = 'scoped memory for discriminator_forward.1']
    %14 = vsyncpa [#allocation4], 0
    // Predicated region
    $region2: #{discriminator_forward.1} parent=1 // pred_check
      _
    $region3: #{discriminator_forward.1} parent=1 // pred_check_branch
      %16 = sbr.rel (0) target = $region5
    $region4: #{discriminator_forward.1} parent=1 // pred_region
      _
    $region5: #{discriminator_forward.1} parent=1 // pred_fallthru
      _
    // Predicated region
    $region6: #{discriminator_forward.1} parent=1 // pred_check
      _
    $region7: #{discriminator_forward.1} parent=1 // pred_check_branch
      %18 = sbr.rel (0) target = $region9
    $region8: #{discriminator_forward.1} parent=1 // pred_region
      %s20 = ssub.s32 28672, 28672
      %21 = vsyncadd [#allocation4], %s20
      %s22 = sshll.u32 [#allocation3], 4
      %s23 = int_to_ptr.vmem [resolvable:$true] %s22
      %28 = dma.hbm_to_vmem [thread:$0]  %s1, 28672, %s23, [#allocation4], 256, 256, 16
    $region9: #{discriminator_forward.1} parent=1 // pred_fallthru
      _
    // Predicated region
    $region10: #{discriminator_forward.1} parent=1 // pred_check
      _
    $region11: #{discriminator_forward.1} parent=1 // pred_check_branch
      %30 = sbr.rel (0) target = $region13
    $region12: #{discriminator_forward.1} parent=1 // pred_region
      _
    $region13: #{discriminator_forward.1} parent=1 // pred_fallthru
      _
    // Predicated region
    $region14: #{discriminator_forward.1} parent=1 // pred_check
      _
    $region15: #{discriminator_forward.1} parent=1 // pred_check_branch
      %32 = sbr.rel (0) target = $region17
    $region16: #{discriminator_forward.1} parent=1 // pred_region
      _
    $region17: #{discriminator_forward.1} parent=1 // pred_fallthru
      _
    // Predicated region
    $region18: #{discriminator_forward.1} parent=1 // pred_check
      _
    $region19: #{discriminator_forward.1} parent=1 // pred_check_branch
      %34 = sbr.rel (0) target = $region21
    $region20: #{discriminator_forward.1} parent=1 // pred_region
      _
    $region21: #{discriminator_forward.1} parent=1 // pred_fallthru
      _
    // Predicated region
    $region22: #{discriminator_forward.1} parent=1 // pred_check
      _
    $region23: #{discriminator_forward.1} parent=1 // pred_check_branch
      %36 = sbr.rel (0) target = $region25
    $region24: #{discriminator_forward.1} parent=1 // pred_region
      _
    $region25: #{discriminator_forward.1} parent=1 // pred_fallthru
      _
    // Predicated region
    $region26: #{discriminator_forward.1} parent=1 // pred_check
      _
    $region27: #{discriminator_forward.1} parent=1 // pred_check_branch
      %38 = sbr.rel (0) target = $region29
    $region28: #{discriminator_forward.1} parent=1 // pred_region
      _
    $region29: #{discriminator_forward.1} parent=1 // pred_fallthru
      _
    // Predicated region
    $region30: #{discriminator_forward.1} parent=1 // pred_check
      _
    $region31: #{discriminator_forward.1} parent=1 // pred_check_branch
      %40 = sbr.rel (0) target = $region33
    $region32: #{discriminator_forward.1} parent=1 // pred_region
      %41 = dma.done [#allocation4], 28672
    $region33: #{discriminator_forward.1} parent=1 // pred_fallthru
      _
    %v43 = vld [vmem:[%s0] sm:$0xff]
    %v44 = vld [vmem:[%s0 + $0x8] sm:$0xff]
    %v45 = vld [vmem:[%s0 + $0x10] sm:$0xff]
    %v46 = vld [vmem:[%s0 + $0x18] sm:$0xf]
    %v47 = vld [vmem:[#allocation3] sm:$0xff]
    %v48 = vld [vmem:[#allocation3 + $0x8] sm:$0xff]
    %v49 = vld [vmem:[#allocation3 + $0x10] sm:$0xff]
    %v50 = vld [vmem:[#allocation3 + $0x18] sm:$0xff]
    %v51 = vld [vmem:[#allocation3 + $0x20] sm:$0xff]
    %v52 = vld [vmem:[#allocation3 + $0x28] sm:$0xff]
    %v53 = vld [vmem:[#allocation3 + $0x30] sm:$0xff]
    %v54 = vld [vmem:[#allocation3 + $0x38] sm:$0xff]
    %v55 = vld [vmem:[#allocation3 + $0x40] sm:$0xff]
    %v56 = vld [vmem:[#allocation3 + $0x48] sm:$0xff]
    %v57 = vld [vmem:[#allocation3 + $0x50] sm:$0xff]
    %v58 = vld [vmem:[#allocation3 + $0x58] sm:$0xff]
    %v59 = vld [vmem:[#allocation3 + $0x60] sm:$0xff]
    %v60 = vld [vmem:[#allocation3 + $0x68] sm:$0xff]
    %v61 = vld [vmem:[#allocation3 + $0x70] sm:$0xff]
    %v62 = vld [vmem:[#allocation3 + $0x78] sm:$0xff]
    %v63 = vld [vmem:[#allocation3 + $0x80] sm:$0xff]
    %v64 = vld [vmem:[#allocation3 + $0x88] sm:$0xff]
    %v65 = vld [vmem:[#allocation3 + $0x90] sm:$0xff]
    %v66 = vld [vmem:[#allocation3 + $0x98] sm:$0xff]
    %v67 = vld [vmem:[#allocation3 + $0xa0] sm:$0xff]
    %v68 = vld [vmem:[#allocation3 + $0xa8] sm:$0xff]
    %v69 = vld [vmem:[#allocation3 + $0xb0] sm:$0xff]
    %v70 = vld [vmem:[#allocation3 + $0xb8] sm:$0xff]
    %v71 = vld [vmem:[#allocation3 + $0xc0] sm:$0xff]
    %v72 = vld [vmem:[#allocation3 + $0xc8] sm:$0xff]
    %v73 = vld [vmem:[#allocation3 + $0xd0] sm:$0xff]
    %v74 = vld [vmem:[#allocation3 + $0xd8] sm:$0xff]
    %v75 = vld [vmem:[#allocation3 + $0xe0] sm:$0xff]
    %v76 = vld [vmem:[#allocation3 + $0xe8] sm:$0xff]
    %v77 = vld [vmem:[#allocation3 + $0xf0] sm:$0xff]
    %v78 = vld [vmem:[#allocation3 + $0xf8] sm:$0xff]
    %v79 = vld [vmem:[#allocation3 + $0x100] sm:$0xff]
    %v80 = vld [vmem:[#allocation3 + $0x108] sm:$0xff]
    %v81 = vld [vmem:[#allocation3 + $0x110] sm:$0xff]
    %v82 = vld [vmem:[#allocation3 + $0x118] sm:$0xff]
    %v83 = vld [vmem:[#allocation3 + $0x120] sm:$0xff]
    %v84 = vld [vmem:[#allocation3 + $0x128] sm:$0xff]
    %v85 = vld [vmem:[#allocation3 + $0x130] sm:$0xff]
    %v86 = vld [vmem:[#allocation3 + $0x138] sm:$0xff]
    %v87 = vld [vmem:[#allocation3 + $0x140] sm:$0xff]
    %v88 = vld [vmem:[#allocation3 + $0x148] sm:$0xff]
    %v89 = vld [vmem:[#allocation3 + $0x150] sm:$0xff]
    %v90 = vld [vmem:[#allocation3 + $0x158] sm:$0xff]
    %v91 = vld [vmem:[#allocation3 + $0x160] sm:$0xff]
    %v92 = vld [vmem:[#allocation3 + $0x168] sm:$0xff]
    %v93 = vld [vmem:[#allocation3 + $0x170] sm:$0xff]
    %v94 = vld [vmem:[#allocation3 + $0x178] sm:$0xff]
    %v95 = vld [vmem:[#allocation3 + $0x180] sm:$0xff]
    %v96 = vld [vmem:[#allocation3 + $0x188] sm:$0xff]
    %v97 = vld [vmem:[#allocation3 + $0x190] sm:$0xff]
    %v98 = vld [vmem:[#allocation3 + $0x198] sm:$0xff]
    %v99 = vld [vmem:[#allocation3 + $0x1a0] sm:$0xff]
    %v100 = vld [vmem:[#allocation3 + $0x1a8] sm:$0xff]
    %v101 = vld [vmem:[#allocation3 + $0x1b0] sm:$0xff]
    %v102 = vld [vmem:[#allocation3 + $0x1b8] sm:$0xff]
    %v103 = vld [vmem:[#allocation3 + $0x1c0] sm:$0xff]
    %v104 = vld [vmem:[#allocation3 + $0x1c8] sm:$0xff]
    %v105 = vld [vmem:[#allocation3 + $0x1d0] sm:$0xff]
    %v106 = vld [vmem:[#allocation3 + $0x1d8] sm:$0xff]
    %v107 = vld [vmem:[#allocation3 + $0x1e0] sm:$0xff]
    %v108 = vld [vmem:[#allocation3 + $0x1e8] sm:$0xff]
    %v109 = vld [vmem:[#allocation3 + $0x1f0] sm:$0xff]
    %v110 = vld [vmem:[#allocation3 + $0x1f8] sm:$0xff]
    %v111 = vld [vmem:[#allocation3 + $0x200] sm:$0xff]
    %v112 = vld [vmem:[#allocation3 + $0x208] sm:$0xff]
    %v113 = vld [vmem:[#allocation3 + $0x210] sm:$0xff]
    %v114 = vld [vmem:[#allocation3 + $0x218] sm:$0xff]
    %v115 = vld [vmem:[#allocation3 + $0x220] sm:$0xff]
    %v116 = vld [vmem:[#allocation3 + $0x228] sm:$0xff]
    %v117 = vld [vmem:[#allocation3 + $0x230] sm:$0xff]
    %v118 = vld [vmem:[#allocation3 + $0x238] sm:$0xff]
    %v119 = vld [vmem:[#allocation3 + $0x240] sm:$0xff]
    %v120 = vld [vmem:[#allocation3 + $0x248] sm:$0xff]
    %v121 = vld [vmem:[#allocation3 + $0x250] sm:$0xff]
    %v122 = vld [vmem:[#allocation3 + $0x258] sm:$0xff]
    %v123 = vld [vmem:[#allocation3 + $0x260] sm:$0xff]
    %v124 = vld [vmem:[#allocation3 + $0x268] sm:$0xff]
    %v125 = vld [vmem:[#allocation3 + $0x270] sm:$0xff]
    %v126 = vld [vmem:[#allocation3 + $0x278] sm:$0xff]
    %v127 = vld [vmem:[#allocation3 + $0x280] sm:$0xff]
    %v128 = vld [vmem:[#allocation3 + $0x288] sm:$0xff]
    %v129 = vld [vmem:[#allocation3 + $0x290] sm:$0xff]
    %v130 = vld [vmem:[#allocation3 + $0x298] sm:$0xff]
    %v131 = vld [vmem:[#allocation3 + $0x2a0] sm:$0xff]
    %v132 = vld [vmem:[#allocation3 + $0x2a8] sm:$0xff]
    %v133 = vld [vmem:[#allocation3 + $0x2b0] sm:$0xff]
    %v134 = vld [vmem:[#allocation3 + $0x2b8] sm:$0xff]
    %v135 = vld [vmem:[#allocation3 + $0x2c0] sm:$0xff]
    %v136 = vld [vmem:[#allocation3 + $0x2c8] sm:$0xff]
    %v137 = vld [vmem:[#allocation3 + $0x2d0] sm:$0xff]
    %v138 = vld [vmem:[#allocation3 + $0x2d8] sm:$0xff]
    %v139 = vld [vmem:[#allocation3 + $0x2e0] sm:$0xff]
    %v140 = vld [vmem:[#allocation3 + $0x2e8] sm:$0xff]
    %v141 = vld [vmem:[#allocation3 + $0x2f0] sm:$0xff]
    %v142 = vld [vmem:[#allocation3 + $0x2f8] sm:$0xff]
    %v143 = vld [vmem:[#allocation3 + $0x300] sm:$0xff]
    %v144 = vld [vmem:[#allocation3 + $0x308] sm:$0xff]
    %v145 = vld [vmem:[#allocation3 + $0x310] sm:$0xff]
    %v146 = vld [vmem:[#allocation3 + $0x318] sm:$0xff]
    %v147 = vld [vmem:[#allocation3 + $0x320] sm:$0xff]
    %v148 = vld [vmem:[#allocation3 + $0x328] sm:$0xff]
    %v149 = vld [vmem:[#allocation3 + $0x330] sm:$0xff]
    %v150 = vld [vmem:[#allocation3 + $0x338] sm:$0xff]
    %v151 = vld [vmem:[#allocation3 + $0x340] sm:$0xff]
    %v152 = vld [vmem:[#allocation3 + $0x348] sm:$0xff]
    %v153 = vld [vmem:[#allocation3 + $0x350] sm:$0xff]
    %v154 = vld [vmem:[#allocation3 + $0x358] sm:$0xff]
    %v155 = vld [vmem:[#allocation3 + $0x360] sm:$0xff]
    %v156 = vld [vmem:[#allocation3 + $0x368] sm:$0xff]
    %v157 = vld [vmem:[#allocation3 + $0x370] sm:$0xff]
    %v158 = vld [vmem:[#allocation3 + $0x378] sm:$0xff]
    %v159 = vld [vmem:[#allocation3 + $0x380] sm:$0xff]
    %v160 = vld [vmem:[#allocation3 + $0x388] sm:$0xff]
    %v161 = vld [vmem:[#allocation3 + $0x390] sm:$0xff]
    %v162 = vld [vmem:[#allocation3 + $0x398] sm:$0xff]
    %v163 = vld [vmem:[#allocation3 + $0x3a0] sm:$0xff]
    %v164 = vld [vmem:[#allocation3 + $0x3a8] sm:$0xff]
    %v165 = vld [vmem:[#allocation3 + $0x3b0] sm:$0xff]
    %v166 = vld [vmem:[#allocation3 + $0x3b8] sm:$0xff]
    %v167 = vld [vmem:[#allocation3 + $0x3c0] sm:$0xff]
    %v168 = vld [vmem:[#allocation3 + $0x3c8] sm:$0xff]
    %v169 = vld [vmem:[#allocation3 + $0x3d0] sm:$0xff]
    %v170 = vld [vmem:[#allocation3 + $0x3d8] sm:$0xff]
    %v171 = vld [vmem:[#allocation3 + $0x3e0] sm:$0xff]
    %v172 = vld [vmem:[#allocation3 + $0x3e8] sm:$0xff]
    %v173 = vld [vmem:[#allocation3 + $0x3f0] sm:$0xff]
    %v174 = vld [vmem:[#allocation3 + $0x3f8] sm:$0xff]
    %v175 = vld [vmem:[#allocation3 + $0x400] sm:$0xff]
    %v176 = vld [vmem:[#allocation3 + $0x408] sm:$0xff]
    %v177 = vld [vmem:[#allocation3 + $0x410] sm:$0xff]
    %v178 = vld [vmem:[#allocation3 + $0x418] sm:$0xff]
    %v179 = vld [vmem:[#allocation3 + $0x420] sm:$0xff]
    %v180 = vld [vmem:[#allocation3 + $0x428] sm:$0xff]
    %v181 = vld [vmem:[#allocation3 + $0x430] sm:$0xff]
    %v182 = vld [vmem:[#allocation3 + $0x438] sm:$0xff]
    %v183 = vld [vmem:[#allocation3 + $0x440] sm:$0xff]
    %v184 = vld [vmem:[#allocation3 + $0x448] sm:$0xff]
    %v185 = vld [vmem:[#allocation3 + $0x450] sm:$0xff]
    %v186 = vld [vmem:[#allocation3 + $0x458] sm:$0xff]
    %v187 = vld [vmem:[#allocation3 + $0x460] sm:$0xff]
    %v188 = vld [vmem:[#allocation3 + $0x468] sm:$0xff]
    %v189 = vld [vmem:[#allocation3 + $0x470] sm:$0xff]
    %v190 = vld [vmem:[#allocation3 + $0x478] sm:$0xff]
    %v191 = vld [vmem:[#allocation3 + $0x480] sm:$0xff]
    %v192 = vld [vmem:[#allocation3 + $0x488] sm:$0xff]
    %v193 = vld [vmem:[#allocation3 + $0x490] sm:$0xff]
    %v194 = vld [vmem:[#allocation3 + $0x498] sm:$0xff]
    %v195 = vld [vmem:[#allocation3 + $0x4a0] sm:$0xff]
    %v196 = vld [vmem:[#allocation3 + $0x4a8] sm:$0xff]
    %v197 = vld [vmem:[#allocation3 + $0x4b0] sm:$0xff]
    %v198 = vld [vmem:[#allocation3 + $0x4b8] sm:$0xff]
    %v199 = vld [vmem:[#allocation3 + $0x4c0] sm:$0xff]
    %v200 = vld [vmem:[#allocation3 + $0x4c8] sm:$0xff]
    %v201 = vld [vmem:[#allocation3 + $0x4d0] sm:$0xff]
    %v202 = vld [vmem:[#allocation3 + $0x4d8] sm:$0xff]
    %v203 = vld [vmem:[#allocation3 + $0x4e0] sm:$0xff]
    %v204 = vld [vmem:[#allocation3 + $0x4e8] sm:$0xff]
    %v205 = vld [vmem:[#allocation3 + $0x4f0] sm:$0xff]
    %v206 = vld [vmem:[#allocation3 + $0x4f8] sm:$0xff]
    %v207 = vld [vmem:[#allocation3 + $0x500] sm:$0xff]
    %v208 = vld [vmem:[#allocation3 + $0x508] sm:$0xff]
    %v209 = vld [vmem:[#allocation3 + $0x510] sm:$0xff]
    %v210 = vld [vmem:[#allocation3 + $0x518] sm:$0xff]
    %v211 = vld [vmem:[#allocation3 + $0x520] sm:$0xff]
    %v212 = vld [vmem:[#allocation3 + $0x528] sm:$0xff]
    %v213 = vld [vmem:[#allocation3 + $0x530] sm:$0xff]
    %v214 = vld [vmem:[#allocation3 + $0x538] sm:$0xff]
    %v215 = vld [vmem:[#allocation3 + $0x540] sm:$0xff]
    %v216 = vld [vmem:[#allocation3 + $0x548] sm:$0xff]
    %v217 = vld [vmem:[#allocation3 + $0x550] sm:$0xff]
    %v218 = vld [vmem:[#allocation3 + $0x558] sm:$0xff]
    %v219 = vld [vmem:[#allocation3 + $0x560] sm:$0xff]
    %v220 = vld [vmem:[#allocation3 + $0x568] sm:$0xff]
    %v221 = vld [vmem:[#allocation3 + $0x570] sm:$0xff]
    %v222 = vld [vmem:[#allocation3 + $0x578] sm:$0xff]
    %v223 = vld [vmem:[#allocation3 + $0x580] sm:$0xff]
    %v224 = vld [vmem:[#allocation3 + $0x588] sm:$0xff]
    %v225 = vld [vmem:[#allocation3 + $0x590] sm:$0xff]
    %v226 = vld [vmem:[#allocation3 + $0x598] sm:$0xff]
    %v227 = vld [vmem:[#allocation3 + $0x5a0] sm:$0xff]
    %v228 = vld [vmem:[#allocation3 + $0x5a8] sm:$0xff]
    %v229 = vld [vmem:[#allocation3 + $0x5b0] sm:$0xff]
    %v230 = vld [vmem:[#allocation3 + $0x5b8] sm:$0xff]
    %v231 = vld [vmem:[#allocation3 + $0x5c0] sm:$0xff]
    %v232 = vld [vmem:[#allocation3 + $0x5c8] sm:$0xff]
    %v233 = vld [vmem:[#allocation3 + $0x5d0] sm:$0xff]
    %v234 = vld [vmem:[#allocation3 + $0x5d8] sm:$0xff]
    %v235 = vld [vmem:[#allocation3 + $0x5e0] sm:$0xff]
    %v236 = vld [vmem:[#allocation3 + $0x5e8] sm:$0xff]
    %v237 = vld [vmem:[#allocation3 + $0x5f0] sm:$0xff]
    %v238 = vld [vmem:[#allocation3 + $0x5f8] sm:$0xff]
    %v239 = vld [vmem:[#allocation3 + $0x600] sm:$0xff]
    %v240 = vld [vmem:[#allocation3 + $0x608] sm:$0xff]
    %v241 = vld [vmem:[#allocation3 + $0x610] sm:$0xff]
    %v242 = vld [vmem:[#allocation3 + $0x618] sm:$0xff]
    %v243 = vld [vmem:[#allocation3 + $0x620] sm:$0xff]
    %v244 = vld [vmem:[#allocation3 + $0x628] sm:$0xff]
    %v245 = vld [vmem:[#allocation3 + $0x630] sm:$0xff]
    %v246 = vld [vmem:[#allocation3 + $0x638] sm:$0xff]
    %v247 = vld [vmem:[#allocation3 + $0x640] sm:$0xff]
    %v248 = vld [vmem:[#allocation3 + $0x648] sm:$0xff]
    %v249 = vld [vmem:[#allocation3 + $0x650] sm:$0xff]
    %v250 = vld [vmem:[#allocation3 + $0x658] sm:$0xff]
    %v251 = vld [vmem:[#allocation3 + $0x660] sm:$0xff]
    %v252 = vld [vmem:[#allocation3 + $0x668] sm:$0xff]
    %v253 = vld [vmem:[#allocation3 + $0x670] sm:$0xff]
    %v254 = vld [vmem:[#allocation3 + $0x678] sm:$0xff]
    %v255 = vld [vmem:[#allocation3 + $0x680] sm:$0xff]
    %v256 = vld [vmem:[#allocation3 + $0x688] sm:$0xff]
    %v257 = vld [vmem:[#allocation3 + $0x690] sm:$0xff]
    %v258 = vld [vmem:[#allocation3 + $0x698] sm:$0xff]
    %v259 = vld [vmem:[#allocation3 + $0x6a0] sm:$0xff]
    %v260 = vld [vmem:[#allocation3 + $0x6a8] sm:$0xff]
    %v261 = vld [vmem:[#allocation3 + $0x6b0] sm:$0xff]
    %v262 = vld [vmem:[#allocation3 + $0x6b8] sm:$0xff]
    %v263 = vld [vmem:[#allocation3 + $0x6c0] sm:$0xff]
    %v264 = vld [vmem:[#allocation3 + $0x6c8] sm:$0xff]
    %v265 = vld [vmem:[#allocation3 + $0x6d0] sm:$0xff]
    %v266 = vld [vmem:[#allocation3 + $0x6d8] sm:$0xff]
    %v267 = vld [vmem:[#allocation3 + $0x6e0] sm:$0xff]
    %v268 = vld [vmem:[#allocation3 + $0x6e8] sm:$0xff]
    %v269 = vld [vmem:[#allocation3 + $0x6f0] sm:$0xff]
    %v270 = vld [vmem:[#allocation3 + $0x6f8] sm:$0xff]
    %v271 = vld [vmem:[%s2] sm:$0xf]
    %v273 = vlaneseq
    %v274 = vshrl.u32 %v273, 7
    %v275 = vsub.s32 0, %v274
    %v276 = vrot.slane %v271, %v275
    %v277 = vlaneseq
    %v278 = vshrl.u32 %v277, 7
    %v279 = vsub.s32 1, %v278
    %v280 = vrot.slane %v271, %v279
    %v281 = vlaneseq
    %v282 = vshrl.u32 %v281, 7
    %v283 = vsub.s32 2, %v282
    %v284 = vrot.slane %v271, %v283
    %v285 = vlaneseq
    %v286 = vshrl.u32 %v285, 7
    %v287 = vsub.s32 3, %v286
    %v288 = vrot.slane %v271, %v287
    %v297 = vunpack.c.l.b16 %v43
    %v298 = vunpack.c.h.b16 %v43
    %v299 = vunpack.c.l.b16 %v44
    %v300 = vunpack.c.h.b16 %v44
    %v301 = vunpack.c.l.b16 %v45
    %v302 = vunpack.c.h.b16 %v45
    %v303 = vunpack.c.l.b16 %v46
    %v304 = vpack.c.b16 %v297, %v297
    %v305 = vpack.c.b16 %v298, %v298
    %v306 = vpack.c.b16 %v299, %v299
    %v307 = vpack.c.b16 %v300, %v300
    %v308 = vpack.c.b16 %v301, %v301
    %v309 = vpack.c.b16 %v302, %v302
    %v310 = vpack.c.b16 %v303, %v303
    %v542 = vunpack.c.l.b16 %v47
    %v543 = vunpack.c.h.b16 %v47
    %v544 = vunpack.c.l.b16 %v48
    %v545 = vunpack.c.h.b16 %v48
    %v546 = vunpack.c.l.b16 %v49
    %v547 = vunpack.c.h.b16 %v49
    %v548 = vunpack.c.l.b16 %v50
    %v549 = vunpack.c.h.b16 %v50
    %v550 = vunpack.c.l.b16 %v51
    %v551 = vunpack.c.h.b16 %v51
    %v552 = vunpack.c.l.b16 %v52
    %v553 = vunpack.c.h.b16 %v52
    %v554 = vunpack.c.l.b16 %v53
    %v555 = vunpack.c.h.b16 %v53
    %v556 = vunpack.c.l.b16 %v54
    %v557 = vunpack.c.h.b16 %v54
    %v558 = vunpack.c.l.b16 %v55
    %v559 = vunpack.c.h.b16 %v55
    %v560 = vunpack.c.l.b16 %v56
    %v561 = vunpack.c.h.b16 %v56
    %v562 = vunpack.c.l.b16 %v57
    %v563 = vunpack.c.h.b16 %v57
    %v564 = vunpack.c.l.b16 %v58
    %v565 = vunpack.c.h.b16 %v58
    %v566 = vunpack.c.l.b16 %v59
    %v567 = vunpack.c.h.b16 %v59
    %v568 = vunpack.c.l.b16 %v60
    %v569 = vunpack.c.h.b16 %v60
    %v570 = vunpack.c.l.b16 %v61
    %v571 = vunpack.c.h.b16 %v61
    %v572 = vunpack.c.l.b16 %v62
    %v573 = vunpack.c.h.b16 %v62
    %v574 = vunpack.c.l.b16 %v63
    %v575 = vunpack.c.h.b16 %v63
    %v576 = vunpack.c.l.b16 %v64
    %v577 = vunpack.c.h.b16 %v64
    %v578 = vunpack.c.l.b16 %v65
    %v579 = vunpack.c.h.b16 %v65
    %v580 = vunpack.c.l.b16 %v66
    %v581 = vunpack.c.h.b16 %v66
    %v582 = vunpack.c.l.b16 %v67
    %v583 = vunpack.c.h.b16 %v67
    %v584 = vunpack.c.l.b16 %v68
    %v585 = vunpack.c.h.b16 %v68
    %v586 = vunpack.c.l.b16 %v69
    %v587 = vunpack.c.h.b16 %v69
    %v588 = vunpack.c.l.b16 %v70
    %v589 = vunpack.c.h.b16 %v70
    %v590 = vunpack.c.l.b16 %v71
    %v591 = vunpack.c.h.b16 %v71
    %v592 = vunpack.c.l.b16 %v72
    %v593 = vunpack.c.h.b16 %v72
    %v594 = vunpack.c.l.b16 %v73
    %v595 = vunpack.c.h.b16 %v73
    %v596 = vunpack.c.l.b16 %v74
    %v597 = vunpack.c.h.b16 %v74
    %v598 = vunpack.c.l.b16 %v75
    %v599 = vunpack.c.h.b16 %v75
    %v600 = vunpack.c.l.b16 %v76
    %v601 = vunpack.c.h.b16 %v76
    %v602 = vunpack.c.l.b16 %v77
    %v603 = vunpack.c.h.b16 %v77
    %v604 = vunpack.c.l.b16 %v78
    %v605 = vunpack.c.h.b16 %v78
    %v606 = vunpack.c.l.b16 %v79
    %v607 = vunpack.c.h.b16 %v79
    %v608 = vunpack.c.l.b16 %v80
    %v609 = vunpack.c.h.b16 %v80
    %v610 = vunpack.c.l.b16 %v81
    %v611 = vunpack.c.h.b16 %v81
    %v612 = vunpack.c.l.b16 %v82
    %v613 = vunpack.c.h.b16 %v82
    %v614 = vunpack.c.l.b16 %v83
    %v615 = vunpack.c.h.b16 %v83
    %v616 = vunpack.c.l.b16 %v84
    %v617 = vunpack.c.h.b16 %v84
    %v618 = vunpack.c.l.b16 %v85
    %v619 = vunpack.c.h.b16 %v85
    %v620 = vunpack.c.l.b16 %v86
    %v621 = vunpack.c.h.b16 %v86
    %v622 = vunpack.c.l.b16 %v87
    %v623 = vunpack.c.h.b16 %v87
    %v624 = vunpack.c.l.b16 %v88
    %v625 = vunpack.c.h.b16 %v88
    %v626 = vunpack.c.l.b16 %v89
    %v627 = vunpack.c.h.b16 %v89
    %v628 = vunpack.c.l.b16 %v90
    %v629 = vunpack.c.h.b16 %v90
    %v630 = vunpack.c.l.b16 %v91
    %v631 = vunpack.c.h.b16 %v91
    %v632 = vunpack.c.l.b16 %v92
    %v633 = vunpack.c.h.b16 %v92
    %v634 = vunpack.c.l.b16 %v93
    %v635 = vunpack.c.h.b16 %v93
    %v636 = vunpack.c.l.b16 %v94
    %v637 = vunpack.c.h.b16 %v94
    %v638 = vunpack.c.l.b16 %v95
    %v639 = vunpack.c.h.b16 %v95
    %v640 = vunpack.c.l.b16 %v96
    %v641 = vunpack.c.h.b16 %v96
    %v642 = vunpack.c.l.b16 %v97
    %v643 = vunpack.c.h.b16 %v97
    %v644 = vunpack.c.l.b16 %v98
    %v645 = vunpack.c.h.b16 %v98
    %v646 = vunpack.c.l.b16 %v99
    %v647 = vunpack.c.h.b16 %v99
    %v648 = vunpack.c.l.b16 %v100
    %v649 = vunpack.c.h.b16 %v100
    %v650 = vunpack.c.l.b16 %v101
    %v651 = vunpack.c.h.b16 %v101
    %v652 = vunpack.c.l.b16 %v102
    %v653 = vunpack.c.h.b16 %v102
    %v654 = vunpack.c.l.b16 %v103
    %v655 = vunpack.c.h.b16 %v103
    %v656 = vunpack.c.l.b16 %v104
    %v657 = vunpack.c.h.b16 %v104
    %v658 = vunpack.c.l.b16 %v105
    %v659 = vunpack.c.h.b16 %v105
    %v660 = vunpack.c.l.b16 %v106
    %v661 = vunpack.c.h.b16 %v106
    %v662 = vunpack.c.l.b16 %v107
    %v663 = vunpack.c.h.b16 %v107
    %v664 = vunpack.c.l.b16 %v108
    %v665 = vunpack.c.h.b16 %v108
    %v666 = vunpack.c.l.b16 %v109
    %v667 = vunpack.c.h.b16 %v109
    %v668 = vunpack.c.l.b16 %v110
    %v669 = vunpack.c.h.b16 %v110
    %v670 = vunpack.c.l.b16 %v111
    %v671 = vunpack.c.h.b16 %v111
    %v672 = vunpack.c.l.b16 %v112
    %v673 = vunpack.c.h.b16 %v112
    %v674 = vunpack.c.l.b16 %v113
    %v675 = vunpack.c.h.b16 %v113
    %v676 = vunpack.c.l.b16 %v114
    %v677 = vunpack.c.h.b16 %v114
    %v678 = vunpack.c.l.b16 %v115
    %v679 = vunpack.c.h.b16 %v115
    %v680 = vunpack.c.l.b16 %v116
    %v681 = vunpack.c.h.b16 %v116
    %v682 = vunpack.c.l.b16 %v117
    %v683 = vunpack.c.h.b16 %v117
    %v684 = vunpack.c.l.b16 %v118
    %v685 = vunpack.c.h.b16 %v118
    %v686 = vunpack.c.l.b16 %v119
    %v687 = vunpack.c.h.b16 %v119
    %v688 = vunpack.c.l.b16 %v120
    %v689 = vunpack.c.h.b16 %v120
    %v690 = vunpack.c.l.b16 %v121
    %v691 = vunpack.c.h.b16 %v121
    %v692 = vunpack.c.l.b16 %v122
    %v693 = vunpack.c.h.b16 %v122
    %v694 = vunpack.c.l.b16 %v123
    %v695 = vunpack.c.h.b16 %v123
    %v696 = vunpack.c.l.b16 %v124
    %v697 = vunpack.c.h.b16 %v124
    %v698 = vunpack.c.l.b16 %v125
    %v699 = vunpack.c.h.b16 %v125
    %v700 = vunpack.c.l.b16 %v126
    %v701 = vunpack.c.h.b16 %v126
    %v702 = vunpack.c.l.b16 %v127
    %v703 = vunpack.c.h.b16 %v127
    %v704 = vunpack.c.l.b16 %v128
    %v705 = vunpack.c.h.b16 %v128
    %v706 = vunpack.c.l.b16 %v129
    %v707 = vunpack.c.h.b16 %v129
    %v708 = vunpack.c.l.b16 %v130
    %v709 = vunpack.c.h.b16 %v130
    %v710 = vunpack.c.l.b16 %v131
    %v711 = vunpack.c.h.b16 %v131
    %v712 = vunpack.c.l.b16 %v132
    %v713 = vunpack.c.h.b16 %v132
    %v714 = vunpack.c.l.b16 %v133
    %v715 = vunpack.c.h.b16 %v133
    %v716 = vunpack.c.l.b16 %v134
    %v717 = vunpack.c.h.b16 %v134
    %v718 = vunpack.c.l.b16 %v135
    %v719 = vunpack.c.h.b16 %v135
    %v720 = vunpack.c.l.b16 %v136
    %v721 = vunpack.c.h.b16 %v136
    %v722 = vunpack.c.l.b16 %v137
    %v723 = vunpack.c.h.b16 %v137
    %v724 = vunpack.c.l.b16 %v138
    %v725 = vunpack.c.h.b16 %v138
    %v726 = vunpack.c.l.b16 %v139
    %v727 = vunpack.c.h.b16 %v139
    %v728 = vunpack.c.l.b16 %v140
    %v729 = vunpack.c.h.b16 %v140
    %v730 = vunpack.c.l.b16 %v141
    %v731 = vunpack.c.h.b16 %v141
    %v732 = vunpack.c.l.b16 %v142
    %v733 = vunpack.c.h.b16 %v142
    %v734 = vunpack.c.l.b16 %v143
    %v735 = vunpack.c.h.b16 %v143
    %v736 = vunpack.c.l.b16 %v144
    %v737 = vunpack.c.h.b16 %v144
    %v738 = vunpack.c.l.b16 %v145
    %v739 = vunpack.c.h.b16 %v145
    %v740 = vunpack.c.l.b16 %v146
    %v741 = vunpack.c.h.b16 %v146
    %v742 = vunpack.c.l.b16 %v147
    %v743 = vunpack.c.h.b16 %v147
    %v744 = vunpack.c.l.b16 %v148
    %v745 = vunpack.c.h.b16 %v148
    %v746 = vunpack.c.l.b16 %v149
    %v747 = vunpack.c.h.b16 %v149
    %v748 = vunpack.c.l.b16 %v150
    %v749 = vunpack.c.h.b16 %v150
    %v750 = vunpack.c.l.b16 %v151
    %v751 = vunpack.c.h.b16 %v151
    %v752 = vunpack.c.l.b16 %v152
    %v753 = vunpack.c.h.b16 %v152
    %v754 = vunpack.c.l.b16 %v153
    %v755 = vunpack.c.h.b16 %v153
    %v756 = vunpack.c.l.b16 %v154
    %v757 = vunpack.c.h.b16 %v154
    %v758 = vunpack.c.l.b16 %v155
    %v759 = vunpack.c.h.b16 %v155
    %v760 = vunpack.c.l.b16 %v156
    %v761 = vunpack.c.h.b16 %v156
    %v762 = vunpack.c.l.b16 %v157
    %v763 = vunpack.c.h.b16 %v157
    %v764 = vunpack.c.l.b16 %v158
    %v765 = vunpack.c.h.b16 %v158
    %v766 = vunpack.c.l.b16 %v159
    %v767 = vunpack.c.h.b16 %v159
    %v768 = vunpack.c.l.b16 %v160
    %v769 = vunpack.c.h.b16 %v160
    %v770 = vunpack.c.l.b16 %v161
    %v771 = vunpack.c.h.b16 %v161
    %v772 = vunpack.c.l.b16 %v162
    %v773 = vunpack.c.h.b16 %v162
    %v774 = vunpack.c.l.b16 %v163
    %v775 = vunpack.c.h.b16 %v163
    %v776 = vunpack.c.l.b16 %v164
    %v777 = vunpack.c.h.b16 %v164
    %v778 = vunpack.c.l.b16 %v165
    %v779 = vunpack.c.h.b16 %v165
    %v780 = vunpack.c.l.b16 %v166
    %v781 = vunpack.c.h.b16 %v166
    %v782 = vunpack.c.l.b16 %v167
    %v783 = vunpack.c.h.b16 %v167
    %v784 = vunpack.c.l.b16 %v168
    %v785 = vunpack.c.h.b16 %v168
    %v786 = vunpack.c.l.b16 %v169
    %v787 = vunpack.c.h.b16 %v169
    %v788 = vunpack.c.l.b16 %v170
    %v789 = vunpack.c.h.b16 %v170
    %v790 = vunpack.c.l.b16 %v171
    %v791 = vunpack.c.h.b16 %v171
    %v792 = vunpack.c.l.b16 %v172
    %v793 = vunpack.c.h.b16 %v172
    %v794 = vunpack.c.l.b16 %v173
    %v795 = vunpack.c.h.b16 %v173
    %v796 = vunpack.c.l.b16 %v174
    %v797 = vunpack.c.h.b16 %v174
    %v798 = vunpack.c.l.b16 %v175
    %v799 = vunpack.c.h.b16 %v175
    %v800 = vunpack.c.l.b16 %v176
    %v801 = vunpack.c.h.b16 %v176
    %v802 = vunpack.c.l.b16 %v177
    %v803 = vunpack.c.h.b16 %v177
    %v804 = vunpack.c.l.b16 %v178
    %v805 = vunpack.c.h.b16 %v178
    %v806 = vunpack.c.l.b16 %v179
    %v807 = vunpack.c.h.b16 %v179
    %v808 = vunpack.c.l.b16 %v180
    %v809 = vunpack.c.h.b16 %v180
    %v810 = vunpack.c.l.b16 %v181
    %v811 = vunpack.c.h.b16 %v181
    %v812 = vunpack.c.l.b16 %v182
    %v813 = vunpack.c.h.b16 %v182
    %v814 = vunpack.c.l.b16 %v183
    %v815 = vunpack.c.h.b16 %v183
    %v816 = vunpack.c.l.b16 %v184
    %v817 = vunpack.c.h.b16 %v184
    %v818 = vunpack.c.l.b16 %v185
    %v819 = vunpack.c.h.b16 %v185
    %v820 = vunpack.c.l.b16 %v186
    %v821 = vunpack.c.h.b16 %v186
    %v822 = vunpack.c.l.b16 %v187
    %v823 = vunpack.c.h.b16 %v187
    %v824 = vunpack.c.l.b16 %v188
    %v825 = vunpack.c.h.b16 %v188
    %v826 = vunpack.c.l.b16 %v189
    %v827 = vunpack.c.h.b16 %v189
    %v828 = vunpack.c.l.b16 %v190
    %v829 = vunpack.c.h.b16 %v190
    %v830 = vunpack.c.l.b16 %v191
    %v831 = vunpack.c.h.b16 %v191
    %v832 = vunpack.c.l.b16 %v192
    %v833 = vunpack.c.h.b16 %v192
    %v834 = vunpack.c.l.b16 %v193
    %v835 = vunpack.c.h.b16 %v193
    %v836 = vunpack.c.l.b16 %v194
    %v837 = vunpack.c.h.b16 %v194
    %v838 = vunpack.c.l.b16 %v195
    %v839 = vunpack.c.h.b16 %v195
    %v840 = vunpack.c.l.b16 %v196
    %v841 = vunpack.c.h.b16 %v196
    %v842 = vunpack.c.l.b16 %v197
    %v843 = vunpack.c.h.b16 %v197
    %v844 = vunpack.c.l.b16 %v198
    %v845 = vunpack.c.h.b16 %v198
    %v846 = vunpack.c.l.b16 %v199
    %v847 = vunpack.c.h.b16 %v199
    %v848 = vunpack.c.l.b16 %v200
    %v849 = vunpack.c.h.b16 %v200
    %v850 = vunpack.c.l.b16 %v201
    %v851 = vunpack.c.h.b16 %v201
    %v852 = vunpack.c.l.b16 %v202
    %v853 = vunpack.c.h.b16 %v202
    %v854 = vunpack.c.l.b16 %v203
    %v855 = vunpack.c.h.b16 %v203
    %v856 = vunpack.c.l.b16 %v204
    %v857 = vunpack.c.h.b16 %v204
    %v858 = vunpack.c.l.b16 %v205
    %v859 = vunpack.c.h.b16 %v205
    %v860 = vunpack.c.l.b16 %v206
    %v861 = vunpack.c.h.b16 %v206
    %v862 = vunpack.c.l.b16 %v207
    %v863 = vunpack.c.h.b16 %v207
    %v864 = vunpack.c.l.b16 %v208
    %v865 = vunpack.c.h.b16 %v208
    %v866 = vunpack.c.l.b16 %v209
    %v867 = vunpack.c.h.b16 %v209
    %v868 = vunpack.c.l.b16 %v210
    %v869 = vunpack.c.h.b16 %v210
    %v870 = vunpack.c.l.b16 %v211
    %v871 = vunpack.c.h.b16 %v211
    %v872 = vunpack.c.l.b16 %v212
    %v873 = vunpack.c.h.b16 %v212
    %v874 = vunpack.c.l.b16 %v213
    %v875 = vunpack.c.h.b16 %v213
    %v876 = vunpack.c.l.b16 %v214
    %v877 = vunpack.c.h.b16 %v214
    %v878 = vunpack.c.l.b16 %v215
    %v879 = vunpack.c.h.b16 %v215
    %v880 = vunpack.c.l.b16 %v216
    %v881 = vunpack.c.h.b16 %v216
    %v882 = vunpack.c.l.b16 %v217
    %v883 = vunpack.c.h.b16 %v217
    %v884 = vunpack.c.l.b16 %v218
    %v885 = vunpack.c.h.b16 %v218
    %v886 = vunpack.c.l.b16 %v219
    %v887 = vunpack.c.h.b16 %v219
    %v888 = vunpack.c.l.b16 %v220
    %v889 = vunpack.c.h.b16 %v220
    %v890 = vunpack.c.l.b16 %v221
    %v891 = vunpack.c.h.b16 %v221
    %v892 = vunpack.c.l.b16 %v222
    %v893 = vunpack.c.h.b16 %v222
    %v894 = vunpack.c.l.b16 %v223
    %v895 = vunpack.c.h.b16 %v223
    %v896 = vunpack.c.l.b16 %v224
    %v897 = vunpack.c.h.b16 %v224
    %v898 = vunpack.c.l.b16 %v225
    %v899 = vunpack.c.h.b16 %v225
    %v900 = vunpack.c.l.b16 %v226
    %v901 = vunpack.c.h.b16 %v226
    %v902 = vunpack.c.l.b16 %v227
    %v903 = vunpack.c.h.b16 %v227
    %v904 = vunpack.c.l.b16 %v228
    %v905 = vunpack.c.h.b16 %v228
    %v906 = vunpack.c.l.b16 %v229
    %v907 = vunpack.c.h.b16 %v229
    %v908 = vunpack.c.l.b16 %v230
    %v909 = vunpack.c.h.b16 %v230
    %v910 = vunpack.c.l.b16 %v231
    %v911 = vunpack.c.h.b16 %v231
    %v912 = vunpack.c.l.b16 %v232
    %v913 = vunpack.c.h.b16 %v232
    %v914 = vunpack.c.l.b16 %v233
    %v915 = vunpack.c.h.b16 %v233
    %v916 = vunpack.c.l.b16 %v234
    %v917 = vunpack.c.h.b16 %v234
    %v918 = vunpack.c.l.b16 %v235
    %v919 = vunpack.c.h.b16 %v235
    %v920 = vunpack.c.l.b16 %v236
    %v921 = vunpack.c.h.b16 %v236
    %v922 = vunpack.c.l.b16 %v237
    %v923 = vunpack.c.h.b16 %v237
    %v924 = vunpack.c.l.b16 %v238
    %v925 = vunpack.c.h.b16 %v238
    %v926 = vunpack.c.l.b16 %v239
    %v927 = vunpack.c.h.b16 %v239
    %v928 = vunpack.c.l.b16 %v240
    %v929 = vunpack.c.h.b16 %v240
    %v930 = vunpack.c.l.b16 %v241
    %v931 = vunpack.c.h.b16 %v241
    %v932 = vunpack.c.l.b16 %v242
    %v933 = vunpack.c.h.b16 %v242
    %v934 = vunpack.c.l.b16 %v243
    %v935 = vunpack.c.h.b16 %v243
    %v936 = vunpack.c.l.b16 %v244
    %v937 = vunpack.c.h.b16 %v244
    %v938 = vunpack.c.l.b16 %v245
    %v939 = vunpack.c.h.b16 %v245
    %v940 = vunpack.c.l.b16 %v246
    %v941 = vunpack.c.h.b16 %v246
    %v942 = vunpack.c.l.b16 %v247
    %v943 = vunpack.c.h.b16 %v247
    %v944 = vunpack.c.l.b16 %v248
    %v945 = vunpack.c.h.b16 %v248
    %v946 = vunpack.c.l.b16 %v249
    %v947 = vunpack.c.h.b16 %v249
    %v948 = vunpack.c.l.b16 %v250
    %v949 = vunpack.c.h.b16 %v250
    %v950 = vunpack.c.l.b16 %v251
    %v951 = vunpack.c.h.b16 %v251
    %v952 = vunpack.c.l.b16 %v252
    %v953 = vunpack.c.h.b16 %v252
    %v954 = vunpack.c.l.b16 %v253
    %v955 = vunpack.c.h.b16 %v253
    %v956 = vunpack.c.l.b16 %v254
    %v957 = vunpack.c.h.b16 %v254
    %v958 = vunpack.c.l.b16 %v255
    %v959 = vunpack.c.h.b16 %v255
    %v960 = vunpack.c.l.b16 %v256
    %v961 = vunpack.c.h.b16 %v256
    %v962 = vunpack.c.l.b16 %v257
    %v963 = vunpack.c.h.b16 %v257
    %v964 = vunpack.c.l.b16 %v258
    %v965 = vunpack.c.h.b16 %v258
    %v966 = vunpack.c.l.b16 %v259
    %v967 = vunpack.c.h.b16 %v259
    %v968 = vunpack.c.l.b16 %v260
    %v969 = vunpack.c.h.b16 %v260
    %v970 = vunpack.c.l.b16 %v261
    %v971 = vunpack.c.h.b16 %v261
    %v972 = vunpack.c.l.b16 %v262
    %v973 = vunpack.c.h.b16 %v262
    %v974 = vunpack.c.l.b16 %v263
    %v975 = vunpack.c.h.b16 %v263
    %v976 = vunpack.c.l.b16 %v264
    %v977 = vunpack.c.h.b16 %v264
    %v978 = vunpack.c.l.b16 %v265
    %v979 = vunpack.c.h.b16 %v265
    %v980 = vunpack.c.l.b16 %v266
    %v981 = vunpack.c.h.b16 %v266
    %v982 = vunpack.c.l.b16 %v267
    %v983 = vunpack.c.h.b16 %v267
    %v984 = vunpack.c.l.b16 %v268
    %v985 = vunpack.c.h.b16 %v268
    %v986 = vunpack.c.l.b16 %v269
    %v987 = vunpack.c.h.b16 %v269
    %v988 = vunpack.c.l.b16 %v270
    %v989 = vunpack.c.h.b16 %v270
    %v990 = vpack.c.b16 %v546, %v542
    %v991 = vpack.c.b16 %v547, %v543
    %v992 = vpack.c.b16 %v548, %v544
    %v993 = vpack.c.b16 %v549, %v545
    %v994 = vpack.c.b16 %v554, %v550
    %v995 = vpack.c.b16 %v555, %v551
    %v996 = vpack.c.b16 %v556, %v552
    %v997 = vpack.c.b16 %v557, %v553
    %v998 = vpack.c.b16 %v562, %v558
    %v999 = vpack.c.b16 %v563, %v559
    %v1000 = vpack.c.b16 %v564, %v560
    %v1001 = vpack.c.b16 %v565, %v561
    %v1002 = vpack.c.b16 %v570, %v566
    %v1003 = vpack.c.b16 %v571, %v567
    %v1004 = vpack.c.b16 %v572, %v568
    %v1005 = vpack.c.b16 %v573, %v569
    %v1006 = vpack.c.b16 %v578, %v574
    %v1007 = vpack.c.b16 %v579, %v575
    %v1008 = vpack.c.b16 %v580, %v576
    %v1009 = vpack.c.b16 %v581, %v577
    %v1010 = vpack.c.b16 %v586, %v582
    %v1011 = vpack.c.b16 %v587, %v583
    %v1012 = vpack.c.b16 %v588, %v584
    %v1013 = vpack.c.b16 %v589, %v585
    %v1014 = vpack.c.b16 %v594, %v590
    %v1015 = vpack.c.b16 %v595, %v591
    %v1016 = vpack.c.b16 %v596, %v592
    %v1017 = vpack.c.b16 %v597, %v593
    %v1018 = vpack.c.b16 %v602, %v598
    %v1019 = vpack.c.b16 %v603, %v599
    %v1020 = vpack.c.b16 %v604, %v600
    %v1021 = vpack.c.b16 %v605, %v601
    %v1022 = vpack.c.b16 %v610, %v606
    %v1023 = vpack.c.b16 %v611, %v607
    %v1024 = vpack.c.b16 %v612, %v608
    %v1025 = vpack.c.b16 %v613, %v609
    %v1026 = vpack.c.b16 %v618, %v614
    %v1027 = vpack.c.b16 %v619, %v615
    %v1028 = vpack.c.b16 %v620, %v616
    %v1029 = vpack.c.b16 %v621, %v617
    %v1030 = vpack.c.b16 %v626, %v622
    %v1031 = vpack.c.b16 %v627, %v623
    %v1032 = vpack.c.b16 %v628, %v624
    %v1033 = vpack.c.b16 %v629, %v625
    %v1034 = vpack.c.b16 %v634, %v630
    %v1035 = vpack.c.b16 %v635, %v631
    %v1036 = vpack.c.b16 %v636, %v632
    %v1037 = vpack.c.b16 %v637, %v633
    %v1038 = vpack.c.b16 %v642, %v638
    %v1039 = vpack.c.b16 %v643, %v639
    %v1040 = vpack.c.b16 %v644, %v640
    %v1041 = vpack.c.b16 %v645, %v641
    %v1042 = vpack.c.b16 %v650, %v646
    %v1043 = vpack.c.b16 %v651, %v647
    %v1044 = vpack.c.b16 %v652, %v648
    %v1045 = vpack.c.b16 %v653, %v649
    %v1046 = vpack.c.b16 %v658, %v654
    %v1047 = vpack.c.b16 %v659, %v655
    %v1048 = vpack.c.b16 %v660, %v656
    %v1049 = vpack.c.b16 %v661, %v657
    %v1050 = vpack.c.b16 %v666, %v662
    %v1051 = vpack.c.b16 %v667, %v663
    %v1052 = vpack.c.b16 %v668, %v664
    %v1053 = vpack.c.b16 %v669, %v665
    %v1054 = vpack.c.b16 %v674, %v670
    %v1055 = vpack.c.b16 %v675, %v671
    %v1056 = vpack.c.b16 %v676, %v672
    %v1057 = vpack.c.b16 %v677, %v673
    %v1058 = vpack.c.b16 %v682, %v678
    %v1059 = vpack.c.b16 %v683, %v679
    %v1060 = vpack.c.b16 %v684, %v680
    %v1061 = vpack.c.b16 %v685, %v681
    %v1062 = vpack.c.b16 %v690, %v686
    %v1063 = vpack.c.b16 %v691, %v687
    %v1064 = vpack.c.b16 %v692, %v688
    %v1065 = vpack.c.b16 %v693, %v689
    %v1066 = vpack.c.b16 %v698, %v694
    %v1067 = vpack.c.b16 %v699, %v695
    %v1068 = vpack.c.b16 %v700, %v696
    %v1069 = vpack.c.b16 %v701, %v697
    %v1070 = vpack.c.b16 %v706, %v702
    %v1071 = vpack.c.b16 %v707, %v703
    %v1072 = vpack.c.b16 %v708, %v704
    %v1073 = vpack.c.b16 %v709, %v705
    %v1074 = vpack.c.b16 %v714, %v710
    %v1075 = vpack.c.b16 %v715, %v711
    %v1076 = vpack.c.b16 %v716, %v712
    %v1077 = vpack.c.b16 %v717, %v713
    %v1078 = vpack.c.b16 %v722, %v718
    %v1079 = vpack.c.b16 %v723, %v719
    %v1080 = vpack.c.b16 %v724, %v720
    %v1081 = vpack.c.b16 %v725, %v721
    %v1082 = vpack.c.b16 %v730, %v726
    %v1083 = vpack.c.b16 %v731, %v727
    %v1084 = vpack.c.b16 %v732, %v728
    %v1085 = vpack.c.b16 %v733, %v729
    %v1086 = vpack.c.b16 %v738, %v734
    %v1087 = vpack.c.b16 %v739, %v735
    %v1088 = vpack.c.b16 %v740, %v736
    %v1089 = vpack.c.b16 %v741, %v737
    %v1090 = vpack.c.b16 %v746, %v742
    %v1091 = vpack.c.b16 %v747, %v743
    %v1092 = vpack.c.b16 %v748, %v744
    %v1093 = vpack.c.b16 %v749, %v745
    %v1094 = vpack.c.b16 %v754, %v750
    %v1095 = vpack.c.b16 %v755, %v751
    %v1096 = vpack.c.b16 %v756, %v752
    %v1097 = vpack.c.b16 %v757, %v753
    %v1098 = vpack.c.b16 %v762, %v758
    %v1099 = vpack.c.b16 %v763, %v759
    %v1100 = vpack.c.b16 %v764, %v760
    %v1101 = vpack.c.b16 %v765, %v761
    %v1102 = vpack.c.b16 %v770, %v766
    %v1103 = vpack.c.b16 %v771, %v767
    %v1104 = vpack.c.b16 %v772, %v768
    %v1105 = vpack.c.b16 %v773, %v769
    %v1106 = vpack.c.b16 %v778, %v774
    %v1107 = vpack.c.b16 %v779, %v775
    %v1108 = vpack.c.b16 %v780, %v776
    %v1109 = vpack.c.b16 %v781, %v777
    %v1110 = vpack.c.b16 %v786, %v782
    %v1111 = vpack.c.b16 %v787, %v783
    %v1112 = vpack.c.b16 %v788, %v784
    %v1113 = vpack.c.b16 %v789, %v785
    %v1114 = vpack.c.b16 %v794, %v790
    %v1115 = vpack.c.b16 %v795, %v791
    %v1116 = vpack.c.b16 %v796, %v792
    %v1117 = vpack.c.b16 %v797, %v793
    %v1118 = vpack.c.b16 %v802, %v798
    %v1119 = vpack.c.b16 %v803, %v799
    %v1120 = vpack.c.b16 %v804, %v800
    %v1121 = vpack.c.b16 %v805, %v801
    %v1122 = vpack.c.b16 %v810, %v806
    %v1123 = vpack.c.b16 %v811, %v807
    %v1124 = vpack.c.b16 %v812, %v808
    %v1125 = vpack.c.b16 %v813, %v809
    %v1126 = vpack.c.b16 %v818, %v814
    %v1127 = vpack.c.b16 %v819, %v815
    %v1128 = vpack.c.b16 %v820, %v816
    %v1129 = vpack.c.b16 %v821, %v817
    %v1130 = vpack.c.b16 %v826, %v822
    %v1131 = vpack.c.b16 %v827, %v823
    %v1132 = vpack.c.b16 %v828, %v824
    %v1133 = vpack.c.b16 %v829, %v825
    %v1134 = vpack.c.b16 %v834, %v830
    %v1135 = vpack.c.b16 %v835, %v831
    %v1136 = vpack.c.b16 %v836, %v832
    %v1137 = vpack.c.b16 %v837, %v833
    %v1138 = vpack.c.b16 %v842, %v838
    %v1139 = vpack.c.b16 %v843, %v839
    %v1140 = vpack.c.b16 %v844, %v840
    %v1141 = vpack.c.b16 %v845, %v841
    %v1142 = vpack.c.b16 %v850, %v846
    %v1143 = vpack.c.b16 %v851, %v847
    %v1144 = vpack.c.b16 %v852, %v848
    %v1145 = vpack.c.b16 %v853, %v849
    %v1146 = vpack.c.b16 %v858, %v854
    %v1147 = vpack.c.b16 %v859, %v855
    %v1148 = vpack.c.b16 %v860, %v856
    %v1149 = vpack.c.b16 %v861, %v857
    %v1150 = vpack.c.b16 %v866, %v862
    %v1151 = vpack.c.b16 %v867, %v863
    %v1152 = vpack.c.b16 %v868, %v864
    %v1153 = vpack.c.b16 %v869, %v865
    %v1154 = vpack.c.b16 %v874, %v870
    %v1155 = vpack.c.b16 %v875, %v871
    %v1156 = vpack.c.b16 %v876, %v872
    %v1157 = vpack.c.b16 %v877, %v873
    %v1158 = vpack.c.b16 %v882, %v878
    %v1159 = vpack.c.b16 %v883, %v879
    %v1160 = vpack.c.b16 %v884, %v880
    %v1161 = vpack.c.b16 %v885, %v881
    %v1162 = vpack.c.b16 %v890, %v886
    %v1163 = vpack.c.b16 %v891, %v887
    %v1164 = vpack.c.b16 %v892, %v888
    %v1165 = vpack.c.b16 %v893, %v889
    %v1166 = vpack.c.b16 %v898, %v894
    %v1167 = vpack.c.b16 %v899, %v895
    %v1168 = vpack.c.b16 %v900, %v896
    %v1169 = vpack.c.b16 %v901, %v897
    %v1170 = vpack.c.b16 %v906, %v902
    %v1171 = vpack.c.b16 %v907, %v903
    %v1172 = vpack.c.b16 %v908, %v904
    %v1173 = vpack.c.b16 %v909, %v905
    %v1174 = vpack.c.b16 %v914, %v910
    %v1175 = vpack.c.b16 %v915, %v911
    %v1176 = vpack.c.b16 %v916, %v912
    %v1177 = vpack.c.b16 %v917, %v913
    %v1178 = vpack.c.b16 %v922, %v918
    %v1179 = vpack.c.b16 %v923, %v919
    %v1180 = vpack.c.b16 %v924, %v920
    %v1181 = vpack.c.b16 %v925, %v921
    %v1182 = vpack.c.b16 %v930, %v926
    %v1183 = vpack.c.b16 %v931, %v927
    %v1184 = vpack.c.b16 %v932, %v928
    %v1185 = vpack.c.b16 %v933, %v929
    %v1186 = vpack.c.b16 %v938, %v934
    %v1187 = vpack.c.b16 %v939, %v935
    %v1188 = vpack.c.b16 %v940, %v936
    %v1189 = vpack.c.b16 %v941, %v937
    %v1190 = vpack.c.b16 %v946, %v942
    %v1191 = vpack.c.b16 %v947, %v943
    %v1192 = vpack.c.b16 %v948, %v944
    %v1193 = vpack.c.b16 %v949, %v945
    %v1194 = vpack.c.b16 %v954, %v950
    %v1195 = vpack.c.b16 %v955, %v951
    %v1196 = vpack.c.b16 %v956, %v952
    %v1197 = vpack.c.b16 %v957, %v953
    %v1198 = vpack.c.b16 %v962, %v958
    %v1199 = vpack.c.b16 %v963, %v959
    %v1200 = vpack.c.b16 %v964, %v960
    %v1201 = vpack.c.b16 %v965, %v961
    %v1202 = vpack.c.b16 %v970, %v966
    %v1203 = vpack.c.b16 %v971, %v967
    %v1204 = vpack.c.b16 %v972, %v968
    %v1205 = vpack.c.b16 %v973, %v969
    %v1206 = vpack.c.b16 %v978, %v974
    %v1207 = vpack.c.b16 %v979, %v975
    %v1208 = vpack.c.b16 %v980, %v976
    %v1209 = vpack.c.b16 %v981, %v977
    %v1210 = vpack.c.b16 %v986, %v982
    %v1211 = vpack.c.b16 %v987, %v983
    %v1212 = vpack.c.b16 %v988, %v984
    %v1213 = vpack.c.b16 %v989, %v985
    %1438 = vmatprep.subr.bf16.mxu0 %v991
    %1439 = vmatpush1.bf16.msra.mxu0 %v990
    %1440 = vmatprep.subr.bf16.mxu0 %v995
    %1441 = vmatpush1.bf16.msra.mxu0 %v994
    %1442 = vmatprep.subr.bf16.mxu0 %v999
    %1443 = vmatpush1.bf16.msra.mxu0 %v998
    %1444 = vmatprep.subr.bf16.mxu0 %v1003
    %1445 = vmatpush1.bf16.msra.mxu0 %v1002
    %1446 = vmatprep.subr.bf16.mxu0 %v1007
    %1447 = vmatpush1.bf16.msra.mxu0 %v1006
    %1448 = vmatprep.subr.bf16.mxu0 %v1011
    %1449 = vmatpush1.bf16.msra.mxu0 %v1010
    %1450 = vmatprep.subr.bf16.mxu0 %v1015
    %1451 = vmatpush1.bf16.msra.mxu0 %v1014
    %1452 = vmatprep.subr.bf16.mxu0 %v1019
    %1453 = vmatpush1.bf16.msra.mxu0 %v1018
    %1454 = vmatprep.subr.bf16.mxu0 %v1023
    %1455 = vmatpush1.bf16.msra.mxu0 %v1022
    %1456 = vmatprep.subr.bf16.mxu0 %v1027
    %1457 = vmatpush1.bf16.msra.mxu0 %v1026
    %1458 = vmatprep.subr.bf16.mxu0 %v1031
    %1459 = vmatpush1.bf16.msra.mxu0 %v1030
    %1460 = vmatprep.subr.bf16.mxu0 %v1035
    %1461 = vmatpush1.bf16.msra.mxu0 %v1034
    %1462 = vmatprep.subr.bf16.mxu0 %v1039
    %1463 = vmatpush1.bf16.msra.mxu0 %v1038
    %1464 = vmatprep.subr.bf16.mxu0 %v1043
    %1465 = vmatpush1.bf16.msra.mxu0 %v1042
    %1466 = vmatprep.subr.bf16.mxu0 %v1047
    %1467 = vmatpush1.bf16.msra.mxu0 %v1046
    %1468 = vmatprep.subr.bf16.mxu0 %v1051
    %1469 = vmatpush1.bf16.msra.mxu0 %v1050
    %1470 = vmatprep.mubr.bf16.mxu0 %v305
    %1471 = vmatmul.mubr.bf16.gmra.mrb[0].mxu0 %v304
    %v1472 = vpop.f32.mrb[0].mxu0
    %v1473 = vadd.f32 %v276, %v1472
    %v1474 = vpop.f32.mrb[0].mxu0
    %v1475 = vadd.f32 %v280, %v1474
    %v1476 = vpop.f32.mrb[0].mxu0
    %v1477 = vpop.f32.mrb[0].mxu0
    %1478 = vdwg.mxu0
    %1479 = vmatprep.subr.bf16.mxu0 %v1055
    %1480 = vmatpush1.bf16.msra.mxu0 %v1054
    %1481 = vmatprep.subr.bf16.mxu0 %v1059
    %1482 = vmatpush1.bf16.msra.mxu0 %v1058
    %1483 = vmatprep.subr.bf16.mxu0 %v1063
    %1484 = vmatpush1.bf16.msra.mxu0 %v1062
    %1485 = vmatprep.subr.bf16.mxu0 %v1067
    %1486 = vmatpush1.bf16.msra.mxu0 %v1066
    %1487 = vmatprep.subr.bf16.mxu0 %v1071
    %1488 = vmatpush1.bf16.msra.mxu0 %v1070
    %1489 = vmatprep.subr.bf16.mxu0 %v1075
    %1490 = vmatpush1.bf16.msra.mxu0 %v1074
    %1491 = vmatprep.subr.bf16.mxu0 %v1079
    %1492 = vmatpush1.bf16.msra.mxu0 %v1078
    %1493 = vmatprep.subr.bf16.mxu0 %v1083
    %1494 = vmatpush1.bf16.msra.mxu0 %v1082
    %1495 = vmatprep.subr.bf16.mxu0 %v1087
    %1496 = vmatpush1.bf16.msra.mxu0 %v1086
    %1497 = vmatprep.subr.bf16.mxu0 %v1091
    %1498 = vmatpush1.bf16.msra.mxu0 %v1090
    %1499 = vmatprep.subr.bf16.mxu0 %v1095
    %1500 = vmatpush1.bf16.msra.mxu0 %v1094
    %1501 = vmatprep.subr.bf16.mxu0 %v1099
    %1502 = vmatpush1.bf16.msra.mxu0 %v1098
    %1503 = vmatprep.subr.bf16.mxu0 %v1103
    %1504 = vmatpush1.bf16.msra.mxu0 %v1102
    %1505 = vmatprep.subr.bf16.mxu0 %v1107
    %1506 = vmatpush1.bf16.msra.mxu0 %v1106
    %1507 = vmatprep.subr.bf16.mxu0 %v1111
    %1508 = vmatpush1.bf16.msra.mxu0 %v1110
    %1509 = vmatprep.subr.bf16.mxu0 %v1115
    %1510 = vmatpush1.bf16.msra.mxu0 %v1114
    %1511 = vmatprep.mubr.bf16.mxu0 %v307
    %1512 = vmatmul.mubr.bf16.gmra.mrb[0].mxu0 %v306
    %v1513 = vpop.f32.mrb[0].mxu0
    %v1514 = vadd.f32 %v1473, %v1513
    %v1515 = vpop.f32.mrb[0].mxu0
    %v1516 = vadd.f32 %v1475, %v1515
    %v1517 = vpop.f32.mrb[0].mxu0
    %v1518 = vpop.f32.mrb[0].mxu0
    %1519 = vdwg.mxu0
    %1520 = vmatprep.subr.bf16.mxu0 %v1119
    %1521 = vmatpush1.bf16.msra.mxu0 %v1118
    %1522 = vmatprep.subr.bf16.mxu0 %v1123
    %1523 = vmatpush1.bf16.msra.mxu0 %v1122
    %1524 = vmatprep.subr.bf16.mxu0 %v1127
    %1525 = vmatpush1.bf16.msra.mxu0 %v1126
    %1526 = vmatprep.subr.bf16.mxu0 %v1131
    %1527 = vmatpush1.bf16.msra.mxu0 %v1130
    %1528 = vmatprep.subr.bf16.mxu0 %v1135
    %1529 = vmatpush1.bf16.msra.mxu0 %v1134
    %1530 = vmatprep.subr.bf16.mxu0 %v1139
    %1531 = vmatpush1.bf16.msra.mxu0 %v1138
    %1532 = vmatprep.subr.bf16.mxu0 %v1143
    %1533 = vmatpush1.bf16.msra.mxu0 %v1142
    %1534 = vmatprep.subr.bf16.mxu0 %v1147
    %1535 = vmatpush1.bf16.msra.mxu0 %v1146
    %1536 = vmatprep.subr.bf16.mxu0 %v1151
    %1537 = vmatpush1.bf16.msra.mxu0 %v1150
    %1538 = vmatprep.subr.bf16.mxu0 %v1155
    %1539 = vmatpush1.bf16.msra.mxu0 %v1154
    %1540 = vmatprep.subr.bf16.mxu0 %v1159
    %1541 = vmatpush1.bf16.msra.mxu0 %v1158
    %1542 = vmatprep.subr.bf16.mxu0 %v1163
    %1543 = vmatpush1.bf16.msra.mxu0 %v1162
    %1544 = vmatprep.subr.bf16.mxu0 %v1167
    %1545 = vmatpush1.bf16.msra.mxu0 %v1166
    %1546 = vmatprep.subr.bf16.mxu0 %v1171
    %1547 = vmatpush1.bf16.msra.mxu0 %v1170
    %1548 = vmatprep.subr.bf16.mxu0 %v1175
    %1549 = vmatpush1.bf16.msra.mxu0 %v1174
    %1550 = vmatprep.subr.bf16.mxu0 %v1179
    %1551 = vmatpush1.bf16.msra.mxu0 %v1178
    %1552 = vmatprep.mubr.bf16.mxu0 %v309
    %1553 = vmatmul.mubr.bf16.gmra.mrb[0].mxu0 %v308
    %v1554 = vpop.f32.mrb[0].mxu0
    %v1555 = vadd.f32 %v1514, %v1554
    %v1556 = vpop.f32.mrb[0].mxu0
    %v1557 = vadd.f32 %v1516, %v1556
    %v1558 = vpop.f32.mrb[0].mxu0
    %v1559 = vpop.f32.mrb[0].mxu0
    %1560 = vdwg.mxu0
    %1561 = vmatprep.subr.bf16.mxu0 %v1183
    %1562 = vmatpush1.bf16.msra.mxu0 %v1182
    %1563 = vmatprep.subr.bf16.mxu0 %v1187
    %1564 = vmatpush1.bf16.msra.mxu0 %v1186
    %1565 = vmatprep.subr.bf16.mxu0 %v1191
    %1566 = vmatpush1.bf16.msra.mxu0 %v1190
    %1567 = vmatprep.subr.bf16.mxu0 %v1195
    %1568 = vmatpush1.bf16.msra.mxu0 %v1194
    %1569 = vmatprep.subr.bf16.mxu0 %v1199
    %1570 = vmatpush1.bf16.msra.mxu0 %v1198
    %1571 = vmatprep.subr.bf16.mxu0 %v1203
    %1572 = vmatpush1.bf16.msra.mxu0 %v1202
    %1573 = vmatprep.subr.bf16.mxu0 %v1207
    %1574 = vmatpush1.bf16.msra.mxu0 %v1206
    %1575 = vmatprep.subr.bf16.mxu0 %v1211
    %1576 = vmatpush1.bf16.msra.mxu0 %v1210
    %1577 = vmatprep.subr.bf16.mxu0 0
    %1578 = vmatpush1.bf16.msra.mxu0 0
    %1579 = vmatprep.subr.bf16.mxu0 0
    %1580 = vmatpush1.bf16.msra.mxu0 0
    %1581 = vmatprep.subr.bf16.mxu0 0
    %1582 = vmatpush1.bf16.msra.mxu0 0
    %1583 = vmatprep.subr.bf16.mxu0 0
    %1584 = vmatpush1.bf16.msra.mxu0 0
    %1585 = vmatprep.subr.bf16.mxu0 0
    %1586 = vmatpush1.bf16.msra.mxu0 0
    %1587 = vmatprep.subr.bf16.mxu0 0
    %1588 = vmatpush1.bf16.msra.mxu0 0
    %1589 = vmatprep.subr.bf16.mxu0 0
    %1590 = vmatpush1.bf16.msra.mxu0 0
    %1591 = vmatprep.subr.bf16.mxu0 0
    %1592 = vmatpush1.bf16.msra.mxu0 0
    %1593 = vmatprep.mubr.bf16.mxu0 0
    %1594 = vmatmul.mubr.bf16.gmra.mrb[0].mxu0 %v310
    %v1595 = vpop.f32.mrb[0].mxu0
    %v1596 = vadd.f32 %v1555, %v1595
    %v1597 = vpop.f32.mrb[0].mxu0
    %v1598 = vadd.f32 %v1557, %v1597
    %v1599 = vpop.f32.mrb[0].mxu0
    %v1600 = vpop.f32.mrb[0].mxu0
    %1601 = vdwg.mxu0
    %1602 = vmatprep.subr.bf16.mxu0 %v993
    %1603 = vmatpush1.bf16.msra.mxu0 %v992
    %1604 = vmatprep.subr.bf16.mxu0 %v997
    %1605 = vmatpush1.bf16.msra.mxu0 %v996
    %1606 = vmatprep.subr.bf16.mxu0 %v1001
    %1607 = vmatpush1.bf16.msra.mxu0 %v1000
    %1608 = vmatprep.subr.bf16.mxu0 %v1005
    %1609 = vmatpush1.bf16.msra.mxu0 %v1004
    %1610 = vmatprep.subr.bf16.mxu0 %v1009
    %1611 = vmatpush1.bf16.msra.mxu0 %v1008
    %1612 = vmatprep.subr.bf16.mxu0 %v1013
    %1613 = vmatpush1.bf16.msra.mxu0 %v1012
    %1614 = vmatprep.subr.bf16.mxu0 %v1017
    %1615 = vmatpush1.bf16.msra.mxu0 %v1016
    %1616 = vmatprep.subr.bf16.mxu0 %v1021
    %1617 = vmatpush1.bf16.msra.mxu0 %v1020
    %1618 = vmatprep.subr.bf16.mxu0 %v1025
    %1619 = vmatpush1.bf16.msra.mxu0 %v1024
    %1620 = vmatprep.subr.bf16.mxu0 %v1029
    %1621 = vmatpush1.bf16.msra.mxu0 %v1028
    %1622 = vmatprep.subr.bf16.mxu0 %v1033
    %1623 = vmatpush1.bf16.msra.mxu0 %v1032
    %1624 = vmatprep.subr.bf16.mxu0 %v1037
    %1625 = vmatpush1.bf16.msra.mxu0 %v1036
    %1626 = vmatprep.subr.bf16.mxu0 %v1041
    %1627 = vmatpush1.bf16.msra.mxu0 %v1040
    %1628 = vmatprep.subr.bf16.mxu0 %v1045
    %1629 = vmatpush1.bf16.msra.mxu0 %v1044
    %1630 = vmatprep.subr.bf16.mxu0 %v1049
    %1631 = vmatpush1.bf16.msra.mxu0 %v1048
    %1632 = vmatprep.subr.bf16.mxu0 %v1053
    %1633 = vmatpush1.bf16.msra.mxu0 %v1052
    %1634 = vmatprep.mubr.bf16.mxu0 %v305
    %1635 = vmatmul.mubr.bf16.gmra.mrb[0].mxu0 %v304
    %v1636 = vpop.f32.mrb[0].mxu0
    %v1637 = vadd.f32 %v284, %v1636
    %v1638 = vpop.f32.mrb[0].mxu0
    %v1639 = vadd.f32 %v288, %v1638
    %v1640 = vpop.f32.mrb[0].mxu0
    %v1641 = vpop.f32.mrb[0].mxu0
    %1642 = vdwg.mxu0
    %1643 = vmatprep.subr.bf16.mxu0 %v1057
    %1644 = vmatpush1.bf16.msra.mxu0 %v1056
    %1645 = vmatprep.subr.bf16.mxu0 %v1061
    %1646 = vmatpush1.bf16.msra.mxu0 %v1060
    %1647 = vmatprep.subr.bf16.mxu0 %v1065
    %1648 = vmatpush1.bf16.msra.mxu0 %v1064
    %1649 = vmatprep.subr.bf16.mxu0 %v1069
    %1650 = vmatpush1.bf16.msra.mxu0 %v1068
    %1651 = vmatprep.subr.bf16.mxu0 %v1073
    %1652 = vmatpush1.bf16.msra.mxu0 %v1072
    %1653 = vmatprep.subr.bf16.mxu0 %v1077
    %1654 = vmatpush1.bf16.msra.mxu0 %v1076
    %1655 = vmatprep.subr.bf16.mxu0 %v1081
    %1656 = vmatpush1.bf16.msra.mxu0 %v1080
    %1657 = vmatprep.subr.bf16.mxu0 %v1085
    %1658 = vmatpush1.bf16.msra.mxu0 %v1084
    %1659 = vmatprep.subr.bf16.mxu0 %v1089
    %1660 = vmatpush1.bf16.msra.mxu0 %v1088
    %1661 = vmatprep.subr.bf16.mxu0 %v1093
    %1662 = vmatpush1.bf16.msra.mxu0 %v1092
    %1663 = vmatprep.subr.bf16.mxu0 %v1097
    %1664 = vmatpush1.bf16.msra.mxu0 %v1096
    %1665 = vmatprep.subr.bf16.mxu0 %v1101
    %1666 = vmatpush1.bf16.msra.mxu0 %v1100
    %1667 = vmatprep.subr.bf16.mxu0 %v1105
    %1668 = vmatpush1.bf16.msra.mxu0 %v1104
    %1669 = vmatprep.subr.bf16.mxu0 %v1109
    %1670 = vmatpush1.bf16.msra.mxu0 %v1108
    %1671 = vmatprep.subr.bf16.mxu0 %v1113
    %1672 = vmatpush1.bf16.msra.mxu0 %v1112
    %1673 = vmatprep.subr.bf16.mxu0 %v1117
    %1674 = vmatpush1.bf16.msra.mxu0 %v1116
    %1675 = vmatprep.mubr.bf16.mxu0 %v307
    %1676 = vmatmul.mubr.bf16.gmra.mrb[0].mxu0 %v306
    %v1677 = vpop.f32.mrb[0].mxu0
    %v1678 = vadd.f32 %v1637, %v1677
    %v1679 = vpop.f32.mrb[0].mxu0
    %v1680 = vadd.f32 %v1639, %v1679
    %v1681 = vpop.f32.mrb[0].mxu0
    %v1682 = vpop.f32.mrb[0].mxu0
    %1683 = vdwg.mxu0
    %1684 = vmatprep.subr.bf16.mxu0 %v1121
    %1685 = vmatpush1.bf16.msra.mxu0 %v1120
    %1686 = vmatprep.subr.bf16.mxu0 %v1125
    %1687 = vmatpush1.bf16.msra.mxu0 %v1124
    %1688 = vmatprep.subr.bf16.mxu0 %v1129
    %1689 = vmatpush1.bf16.msra.mxu0 %v1128
    %1690 = vmatprep.subr.bf16.mxu0 %v1133
    %1691 = vmatpush1.bf16.msra.mxu0 %v1132
    %1692 = vmatprep.subr.bf16.mxu0 %v1137
    %1693 = vmatpush1.bf16.msra.mxu0 %v1136
    %1694 = vmatprep.subr.bf16.mxu0 %v1141
    %1695 = vmatpush1.bf16.msra.mxu0 %v1140
    %1696 = vmatprep.subr.bf16.mxu0 %v1145
    %1697 = vmatpush1.bf16.msra.mxu0 %v1144
    %1698 = vmatprep.subr.bf16.mxu0 %v1149
    %1699 = vmatpush1.bf16.msra.mxu0 %v1148
    %1700 = vmatprep.subr.bf16.mxu0 %v1153
    %1701 = vmatpush1.bf16.msra.mxu0 %v1152
    %1702 = vmatprep.subr.bf16.mxu0 %v1157
    %1703 = vmatpush1.bf16.msra.mxu0 %v1156
    %1704 = vmatprep.subr.bf16.mxu0 %v1161
    %1705 = vmatpush1.bf16.msra.mxu0 %v1160
    %1706 = vmatprep.subr.bf16.mxu0 %v1165
    %1707 = vmatpush1.bf16.msra.mxu0 %v1164
    %1708 = vmatprep.subr.bf16.mxu0 %v1169
    %1709 = vmatpush1.bf16.msra.mxu0 %v1168
    %1710 = vmatprep.subr.bf16.mxu0 %v1173
    %1711 = vmatpush1.bf16.msra.mxu0 %v1172
    %1712 = vmatprep.subr.bf16.mxu0 %v1177
    %1713 = vmatpush1.bf16.msra.mxu0 %v1176
    %1714 = vmatprep.subr.bf16.mxu0 %v1181
    %1715 = vmatpush1.bf16.msra.mxu0 %v1180
    %1716 = vmatprep.mubr.bf16.mxu0 %v309
    %1717 = vmatmul.mubr.bf16.gmra.mrb[0].mxu0 %v308
    %v1718 = vpop.f32.mrb[0].mxu0
    %v1719 = vadd.f32 %v1678, %v1718
    %v1720 = vpop.f32.mrb[0].mxu0
    %v1721 = vadd.f32 %v1680, %v1720
    %v1722 = vpop.f32.mrb[0].mxu0
    %v1723 = vpop.f32.mrb[0].mxu0
    %1724 = vdwg.mxu0
    %1725 = vmatprep.subr.bf16.mxu0 %v1185
    %1726 = vmatpush1.bf16.msra.mxu0 %v1184
    %1727 = vmatprep.subr.bf16.mxu0 %v1189
    %1728 = vmatpush1.bf16.msra.mxu0 %v1188
    %1729 = vmatprep.subr.bf16.mxu0 %v1193
    %1730 = vmatpush1.bf16.msra.mxu0 %v1192
    %1731 = vmatprep.subr.bf16.mxu0 %v1197
    %1732 = vmatpush1.bf16.msra.mxu0 %v1196
    %1733 = vmatprep.subr.bf16.mxu0 %v1201
    %1734 = vmatpush1.bf16.msra.mxu0 %v1200
    %1735 = vmatprep.subr.bf16.mxu0 %v1205
    %1736 = vmatpush1.bf16.msra.mxu0 %v1204
    %1737 = vmatprep.subr.bf16.mxu0 %v1209
    %1738 = vmatpush1.bf16.msra.mxu0 %v1208
    %1739 = vmatprep.subr.bf16.mxu0 %v1213
    %1740 = vmatpush1.bf16.msra.mxu0 %v1212
    %1741 = vmatprep.subr.bf16.mxu0 0
    %1742 = vmatpush1.bf16.msra.mxu0 0
    %1743 = vmatprep.subr.bf16.mxu0 0
    %1744 = vmatpush1.bf16.msra.mxu0 0
    %1745 = vmatprep.subr.bf16.mxu0 0
    %1746 = vmatpush1.bf16.msra.mxu0 0
    %1747 = vmatprep.subr.bf16.mxu0 0
    %1748 = vmatpush1.bf16.msra.mxu0 0
    %1749 = vmatprep.subr.bf16.mxu0 0
    %1750 = vmatpush1.bf16.msra.mxu0 0
    %1751 = vmatprep.subr.bf16.mxu0 0
    %1752 = vmatpush1.bf16.msra.mxu0 0
    %1753 = vmatprep.subr.bf16.mxu0 0
    %1754 = vmatpush1.bf16.msra.mxu0 0
    %1755 = vmatprep.subr.bf16.mxu0 0
    %1756 = vmatpush1.bf16.msra.mxu0 0
    %1757 = vmatprep.mubr.bf16.mxu0 0
    %1758 = vmatmul.mubr.bf16.gmra.mrb[0].mxu0 %v310
    %v1759 = vpop.f32.mrb[0].mxu0
    %v1760 = vadd.f32 %v1719, %v1759
    %v1761 = vpop.f32.mrb[0].mxu0
    %v1762 = vadd.f32 %v1721, %v1761
    %v1763 = vpop.f32.mrb[0].mxu0
    %v1764 = vpop.f32.mrb[0].mxu0
    %1765 = vdwg.mxu0
    %v1766 = vmul.f32 %v1596, 0.2
    %v1767 = vmul.f32 %v1598, 0.2
    %v1768 = vmul.f32 %v1760, 0.2
    %v1769 = vmul.f32 %v1762, 0.2
    %v1770 = vmax.f32 %v1596, %v1766
    %v1771 = vmax.f32 %v1598, %v1767
    %v1772 = vmax.f32 %v1760, %v1768
    %v1773 = vmax.f32 %v1762, %v1769
    %v1774 = vpack.c.bf16 %v1770, %v1770
    %v1775 = vpack.c.bf16 %v1771, %v1771
    %v1776 = vpack.c.bf16 %v1772, %v1772
    %v1777 = vpack.c.bf16 %v1773, %v1773
    %v1778 = vld [vmem:[%s3] sm:$0xff]
    %v1779 = vld [vmem:[%s3 + $0x8] sm:$0xff]
    %v1780 = vld [vmem:[%s3 + $0x10] sm:$0xff]
    %v1781 = vld [vmem:[%s3 + $0x18] sm:$0xff]
    %v1782 = vld [vmem:[%s3 + $0x20] sm:$0xff]
    %v1783 = vld [vmem:[%s3 + $0x28] sm:$0xff]
    %v1784 = vld [vmem:[%s3 + $0x30] sm:$0xff]
    %v1785 = vld [vmem:[%s3 + $0x38] sm:$0xff]
    %v1786 = vld [vmem:[%s3 + $0x40] sm:$0xff]
    %v1787 = vld [vmem:[%s3 + $0x48] sm:$0xff]
    %v1788 = vld [vmem:[%s3 + $0x50] sm:$0xff]
    %v1789 = vld [vmem:[%s3 + $0x58] sm:$0xff]
    %v1790 = vld [vmem:[%s3 + $0x60] sm:$0xff]
    %v1791 = vld [vmem:[%s3 + $0x68] sm:$0xff]
    %v1792 = vld [vmem:[%s3 + $0x70] sm:$0xff]
    %v1793 = vld [vmem:[%s3 + $0x78] sm:$0xff]
    %v1794 = vld [vmem:[%s3 + $0x80] sm:$0xff]
    %v1795 = vld [vmem:[%s3 + $0x88] sm:$0xff]
    %v1796 = vld [vmem:[%s3 + $0x90] sm:$0xff]
    %v1797 = vld [vmem:[%s3 + $0x98] sm:$0xff]
    %v1798 = vld [vmem:[%s3 + $0xa0] sm:$0xff]
    %v1799 = vld [vmem:[%s3 + $0xa8] sm:$0xff]
    %v1800 = vld [vmem:[%s3 + $0xb0] sm:$0xff]
    %v1801 = vld [vmem:[%s3 + $0xb8] sm:$0xff]
    %v1802 = vld [vmem:[%s3 + $0xc0] sm:$0xff]
    %v1803 = vld [vmem:[%s3 + $0xc8] sm:$0xff]
    %v1804 = vld [vmem:[%s3 + $0xd0] sm:$0xff]
    %v1805 = vld [vmem:[%s3 + $0xd8] sm:$0xff]
    %v1806 = vld [vmem:[%s3 + $0xe0] sm:$0xff]
    %v1807 = vld [vmem:[%s3 + $0xe8] sm:$0xff]
    %v1808 = vld [vmem:[%s3 + $0xf0] sm:$0xff]
    %v1809 = vld [vmem:[%s3 + $0xf8] sm:$0xff]
    %v1810 = vld [vmem:[%s3 + $0x100] sm:$0xff]
    %v1811 = vld [vmem:[%s3 + $0x108] sm:$0xff]
    %v1812 = vld [vmem:[%s3 + $0x110] sm:$0xff]
    %v1813 = vld [vmem:[%s3 + $0x118] sm:$0xff]
    %v1814 = vld [vmem:[%s3 + $0x120] sm:$0xff]
    %v1815 = vld [vmem:[%s3 + $0x128] sm:$0xff]
    %v1816 = vld [vmem:[%s3 + $0x130] sm:$0xff]
    %v1817 = vld [vmem:[%s3 + $0x138] sm:$0xff]
    %v1818 = vld [vmem:[%s3 + $0x140] sm:$0xff]
    %v1819 = vld [vmem:[%s3 + $0x148] sm:$0xff]
    %v1820 = vld [vmem:[%s3 + $0x150] sm:$0xff]
    %v1821 = vld [vmem:[%s3 + $0x158] sm:$0xff]
    %v1822 = vld [vmem:[%s3 + $0x160] sm:$0xff]
    %v1823 = vld [vmem:[%s3 + $0x168] sm:$0xff]
    %v1824 = vld [vmem:[%s3 + $0x170] sm:$0xff]
    %v1825 = vld [vmem:[%s3 + $0x178] sm:$0xff]
    %v1826 = vld [vmem:[%s3 + $0x180] sm:$0xff]
    %v1827 = vld [vmem:[%s3 + $0x188] sm:$0xff]
    %v1828 = vld [vmem:[%s3 + $0x190] sm:$0xff]
    %v1829 = vld [vmem:[%s3 + $0x198] sm:$0xff]
    %v1830 = vld [vmem:[%s3 + $0x1a0] sm:$0xff]
    %v1831 = vld [vmem:[%s3 + $0x1a8] sm:$0xff]
    %v1832 = vld [vmem:[%s3 + $0x1b0] sm:$0xff]
    %v1833 = vld [vmem:[%s3 + $0x1b8] sm:$0xff]
    %v1834 = vld [vmem:[%s3 + $0x1c0] sm:$0xff]
    %v1835 = vld [vmem:[%s3 + $0x1c8] sm:$0xff]
    %v1836 = vld [vmem:[%s3 + $0x1d0] sm:$0xff]
    %v1837 = vld [vmem:[%s3 + $0x1d8] sm:$0xff]
    %v1838 = vld [vmem:[%s3 + $0x1e0] sm:$0xff]
    %v1839 = vld [vmem:[%s3 + $0x1e8] sm:$0xff]
    %v1840 = vld [vmem:[%s3 + $0x1f0] sm:$0xff]
    %v1841 = vld [vmem:[%s3 + $0x1f8] sm:$0xff]
    %v1842 = vld [vmem:[%s4] sm:$0x3]
    %v1844 = vlaneseq
    %v1845 = vshrl.u32 %v1844, 7
    %v1846 = vsub.s32 0, %v1845
    %v1847 = vrot.slane %v1842, %v1846
    %v1848 = vlaneseq
    %v1849 = vshrl.u32 %v1848, 7
    %v1850 = vsub.s32 1, %v1849
    %v1851 = vrot.slane %v1842, %v1850
    %v1918 = vunpack.c.l.b16 %v1778
    %v1919 = vunpack.c.h.b16 %v1778
    %v1920 = vunpack.c.l.b16 %v1779
    %v1921 = vunpack.c.h.b16 %v1779
    %v1922 = vunpack.c.l.b16 %v1780
    %v1923 = vunpack.c.h.b16 %v1780
    %v1924 = vunpack.c.l.b16 %v1781
    %v1925 = vunpack.c.h.b16 %v1781
    %v1926 = vunpack.c.l.b16 %v1782
    %v1927 = vunpack.c.h.b16 %v1782
    %v1928 = vunpack.c.l.b16 %v1783
    %v1929 = vunpack.c.h.b16 %v1783
    %v1930 = vunpack.c.l.b16 %v1784
    %v1931 = vunpack.c.h.b16 %v1784
    %v1932 = vunpack.c.l.b16 %v1785
    %v1933 = vunpack.c.h.b16 %v1785
    %v1934 = vunpack.c.l.b16 %v1786
    %v1935 = vunpack.c.h.b16 %v1786
    %v1936 = vunpack.c.l.b16 %v1787
    %v1937 = vunpack.c.h.b16 %v1787
    %v1938 = vunpack.c.l.b16 %v1788
    %v1939 = vunpack.c.h.b16 %v1788
    %v1940 = vunpack.c.l.b16 %v1789
    %v1941 = vunpack.c.h.b16 %v1789
    %v1942 = vunpack.c.l.b16 %v1790
    %v1943 = vunpack.c.h.b16 %v1790
    %v1944 = vunpack.c.l.b16 %v1791
    %v1945 = vunpack.c.h.b16 %v1791
    %v1946 = vunpack.c.l.b16 %v1792
    %v1947 = vunpack.c.h.b16 %v1792
    %v1948 = vunpack.c.l.b16 %v1793
    %v1949 = vunpack.c.h.b16 %v1793
    %v1950 = vunpack.c.l.b16 %v1794
    %v1951 = vunpack.c.h.b16 %v1794
    %v1952 = vunpack.c.l.b16 %v1795
    %v1953 = vunpack.c.h.b16 %v1795
    %v1954 = vunpack.c.l.b16 %v1796
    %v1955 = vunpack.c.h.b16 %v1796
    %v1956 = vunpack.c.l.b16 %v1797
    %v1957 = vunpack.c.h.b16 %v1797
    %v1958 = vunpack.c.l.b16 %v1798
    %v1959 = vunpack.c.h.b16 %v1798
    %v1960 = vunpack.c.l.b16 %v1799
    %v1961 = vunpack.c.h.b16 %v1799
    %v1962 = vunpack.c.l.b16 %v1800
    %v1963 = vunpack.c.h.b16 %v1800
    %v1964 = vunpack.c.l.b16 %v1801
    %v1965 = vunpack.c.h.b16 %v1801
    %v1966 = vunpack.c.l.b16 %v1802
    %v1967 = vunpack.c.h.b16 %v1802
    %v1968 = vunpack.c.l.b16 %v1803
    %v1969 = vunpack.c.h.b16 %v1803
    %v1970 = vunpack.c.l.b16 %v1804
    %v1971 = vunpack.c.h.b16 %v1804
    %v1972 = vunpack.c.l.b16 %v1805
    %v1973 = vunpack.c.h.b16 %v1805
    %v1974 = vunpack.c.l.b16 %v1806
    %v1975 = vunpack.c.h.b16 %v1806
    %v1976 = vunpack.c.l.b16 %v1807
    %v1977 = vunpack.c.h.b16 %v1807
    %v1978 = vunpack.c.l.b16 %v1808
    %v1979 = vunpack.c.h.b16 %v1808
    %v1980 = vunpack.c.l.b16 %v1809
    %v1981 = vunpack.c.h.b16 %v1809
    %v1982 = vunpack.c.l.b16 %v1810
    %v1983 = vunpack.c.h.b16 %v1810
    %v1984 = vunpack.c.l.b16 %v1811
    %v1985 = vunpack.c.h.b16 %v1811
    %v1986 = vunpack.c.l.b16 %v1812
    %v1987 = vunpack.c.h.b16 %v1812
    %v1988 = vunpack.c.l.b16 %v1813
    %v1989 = vunpack.c.h.b16 %v1813
    %v1990 = vunpack.c.l.b16 %v1814
    %v1991 = vunpack.c.h.b16 %v1814
    %v1992 = vunpack.c.l.b16 %v1815
    %v1993 = vunpack.c.h.b16 %v1815
    %v1994 = vunpack.c.l.b16 %v1816
    %v1995 = vunpack.c.h.b16 %v1816
    %v1996 = vunpack.c.l.b16 %v1817
    %v1997 = vunpack.c.h.b16 %v1817
    %v1998 = vunpack.c.l.b16 %v1818
    %v1999 = vunpack.c.h.b16 %v1818
    %v2000 = vunpack.c.l.b16 %v1819
    %v2001 = vunpack.c.h.b16 %v1819
    %v2002 = vunpack.c.l.b16 %v1820
    %v2003 = vunpack.c.h.b16 %v1820
    %v2004 = vunpack.c.l.b16 %v1821
    %v2005 = vunpack.c.h.b16 %v1821
    %v2006 = vunpack.c.l.b16 %v1822
    %v2007 = vunpack.c.h.b16 %v1822
    %v2008 = vunpack.c.l.b16 %v1823
    %v2009 = vunpack.c.h.b16 %v1823
    %v2010 = vunpack.c.l.b16 %v1824
    %v2011 = vunpack.c.h.b16 %v1824
    %v2012 = vunpack.c.l.b16 %v1825
    %v2013 = vunpack.c.h.b16 %v1825
    %v2014 = vunpack.c.l.b16 %v1826
    %v2015 = vunpack.c.h.b16 %v1826
    %v2016 = vunpack.c.l.b16 %v1827
    %v2017 = vunpack.c.h.b16 %v1827
    %v2018 = vunpack.c.l.b16 %v1828
    %v2019 = vunpack.c.h.b16 %v1828
    %v2020 = vunpack.c.l.b16 %v1829
    %v2021 = vunpack.c.h.b16 %v1829
    %v2022 = vunpack.c.l.b16 %v1830
    %v2023 = vunpack.c.h.b16 %v1830
    %v2024 = vunpack.c.l.b16 %v1831
    %v2025 = vunpack.c.h.b16 %v1831
    %v2026 = vunpack.c.l.b16 %v1832
    %v2027 = vunpack.c.h.b16 %v1832
    %v2028 = vunpack.c.l.b16 %v1833
    %v2029 = vunpack.c.h.b16 %v1833
    %v2030 = vunpack.c.l.b16 %v1834
    %v2031 = vunpack.c.h.b16 %v1834
    %v2032 = vunpack.c.l.b16 %v1835
    %v2033 = vunpack.c.h.b16 %v1835
    %v2034 = vunpack.c.l.b16 %v1836
    %v2035 = vunpack.c.h.b16 %v1836
    %v2036 = vunpack.c.l.b16 %v1837
    %v2037 = vunpack.c.h.b16 %v1837
    %v2038 = vunpack.c.l.b16 %v1838
    %v2039 = vunpack.c.h.b16 %v1838
    %v2040 = vunpack.c.l.b16 %v1839
    %v2041 = vunpack.c.h.b16 %v1839
    %v2042 = vunpack.c.l.b16 %v1840
    %v2043 = vunpack.c.h.b16 %v1840
    %v2044 = vunpack.c.l.b16 %v1841
    %v2045 = vunpack.c.h.b16 %v1841
    %v2046 = vpack.c.b16 %v1920, %v1918
    %v2047 = vpack.c.b16 %v1921, %v1919
    %v2048 = vpack.c.b16 %v1924, %v1922
    %v2049 = vpack.c.b16 %v1925, %v1923
    %v2050 = vpack.c.b16 %v1928, %v1926
    %v2051 = vpack.c.b16 %v1929, %v1927
    %v2052 = vpack.c.b16 %v1932, %v1930
    %v2053 = vpack.c.b16 %v1933, %v1931
    %v2054 = vpack.c.b16 %v1936, %v1934
    %v2055 = vpack.c.b16 %v1937, %v1935
    %v2056 = vpack.c.b16 %v1940, %v1938
    %v2057 = vpack.c.b16 %v1941, %v1939
    %v2058 = vpack.c.b16 %v1944, %v1942
    %v2059 = vpack.c.b16 %v1945, %v1943
    %v2060 = vpack.c.b16 %v1948, %v1946
    %v2061 = vpack.c.b16 %v1949, %v1947
    %v2062 = vpack.c.b16 %v1952, %v1950
    %v2063 = vpack.c.b16 %v1953, %v1951
    %v2064 = vpack.c.b16 %v1956, %v1954
    %v2065 = vpack.c.b16 %v1957, %v1955
    %v2066 = vpack.c.b16 %v1960, %v1958
    %v2067 = vpack.c.b16 %v1961, %v1959
    %v2068 = vpack.c.b16 %v1964, %v1962
    %v2069 = vpack.c.b16 %v1965, %v1963
    %v2070 = vpack.c.b16 %v1968, %v1966
    %v2071 = vpack.c.b16 %v1969, %v1967
    %v2072 = vpack.c.b16 %v1972, %v1970
    %v2073 = vpack.c.b16 %v1973, %v1971
    %v2074 = vpack.c.b16 %v1976, %v1974
    %v2075 = vpack.c.b16 %v1977, %v1975
    %v2076 = vpack.c.b16 %v1980, %v1978
    %v2077 = vpack.c.b16 %v1981, %v1979
    %v2078 = vpack.c.b16 %v1984, %v1982
    %v2079 = vpack.c.b16 %v1985, %v1983
    %v2080 = vpack.c.b16 %v1988, %v1986
    %v2081 = vpack.c.b16 %v1989, %v1987
    %v2082 = vpack.c.b16 %v1992, %v1990
    %v2083 = vpack.c.b16 %v1993, %v1991
    %v2084 = vpack.c.b16 %v1996, %v1994
    %v2085 = vpack.c.b16 %v1997, %v1995
    %v2086 = vpack.c.b16 %v2000, %v1998
    %v2087 = vpack.c.b16 %v2001, %v1999
    %v2088 = vpack.c.b16 %v2004, %v2002
    %v2089 = vpack.c.b16 %v2005, %v2003
    %v2090 = vpack.c.b16 %v2008, %v2006
    %v2091 = vpack.c.b16 %v2009, %v2007
    %v2092 = vpack.c.b16 %v2012, %v2010
    %v2093 = vpack.c.b16 %v2013, %v2011
    %v2094 = vpack.c.b16 %v2016, %v2014
    %v2095 = vpack.c.b16 %v2017, %v2015
    %v2096 = vpack.c.b16 %v2020, %v2018
    %v2097 = vpack.c.b16 %v2021, %v2019
    %v2098 = vpack.c.b16 %v2024, %v2022
    %v2099 = vpack.c.b16 %v2025, %v2023
    %v2100 = vpack.c.b16 %v2028, %v2026
    %v2101 = vpack.c.b16 %v2029, %v2027
    %v2102 = vpack.c.b16 %v2032, %v2030
    %v2103 = vpack.c.b16 %v2033, %v2031
    %v2104 = vpack.c.b16 %v2036, %v2034
    %v2105 = vpack.c.b16 %v2037, %v2035
    %v2106 = vpack.c.b16 %v2040, %v2038
    %v2107 = vpack.c.b16 %v2041, %v2039
    %v2108 = vpack.c.b16 %v2044, %v2042
    %v2109 = vpack.c.b16 %v2045, %v2043
    %2174 = vmatprep.subr.bf16.mxu0 %v2047
    %2175 = vmatpush1.bf16.msra.mxu0 %v2046
    %2176 = vmatprep.subr.bf16.mxu0 %v2049
    %2177 = vmatpush1.bf16.msra.mxu0 %v2048
    %2178 = vmatprep.subr.bf16.mxu0 %v2051
    %2179 = vmatpush1.bf16.msra.mxu0 %v2050
    %2180 = vmatprep.subr.bf16.mxu0 %v2053
    %2181 = vmatpush1.bf16.msra.mxu0 %v2052
    %2182 = vmatprep.subr.bf16.mxu0 %v2055
    %2183 = vmatpush1.bf16.msra.mxu0 %v2054
    %2184 = vmatprep.subr.bf16.mxu0 %v2057
    %2185 = vmatpush1.bf16.msra.mxu0 %v2056
    %2186 = vmatprep.subr.bf16.mxu0 %v2059
    %2187 = vmatpush1.bf16.msra.mxu0 %v2058
    %2188 = vmatprep.subr.bf16.mxu0 %v2061
    %2189 = vmatpush1.bf16.msra.mxu0 %v2060
    %2190 = vmatprep.subr.bf16.mxu0 %v2063
    %2191 = vmatpush1.bf16.msra.mxu0 %v2062
    %2192 = vmatprep.subr.bf16.mxu0 %v2065
    %2193 = vmatpush1.bf16.msra.mxu0 %v2064
    %2194 = vmatprep.subr.bf16.mxu0 %v2067
    %2195 = vmatpush1.bf16.msra.mxu0 %v2066
    %2196 = vmatprep.subr.bf16.mxu0 %v2069
    %2197 = vmatpush1.bf16.msra.mxu0 %v2068
    %2198 = vmatprep.subr.bf16.mxu0 %v2071
    %2199 = vmatpush1.bf16.msra.mxu0 %v2070
    %2200 = vmatprep.subr.bf16.mxu0 %v2073
    %2201 = vmatpush1.bf16.msra.mxu0 %v2072
    %2202 = vmatprep.subr.bf16.mxu0 %v2075
    %2203 = vmatpush1.bf16.msra.mxu0 %v2074
    %2204 = vmatprep.subr.bf16.mxu0 %v2077
    %2205 = vmatpush1.bf16.msra.mxu0 %v2076
    %2206 = vmatprep.mubr.bf16.mxu0 %v1775
    %2207 = vmatmul.mubr.bf16.gmra.mrb[0].mxu0 %v1774
    %v2208 = vpop.f32.mrb[0].mxu0
    %v2209 = vadd.f32 %v1847, %v2208
    %v2210 = vpop.f32.mrb[0].mxu0
    %v2211 = vadd.f32 %v1851, %v2210
    %v2212 = vpop.f32.mrb[0].mxu0
    %v2213 = vpop.f32.mrb[0].mxu0
    %2214 = vdwg.mxu0
    %2215 = vmatprep.subr.bf16.mxu0 %v2079
    %2216 = vmatpush1.bf16.msra.mxu0 %v2078
    %2217 = vmatprep.subr.bf16.mxu0 %v2081
    %2218 = vmatpush1.bf16.msra.mxu0 %v2080
    %2219 = vmatprep.subr.bf16.mxu0 %v2083
    %2220 = vmatpush1.bf16.msra.mxu0 %v2082
    %2221 = vmatprep.subr.bf16.mxu0 %v2085
    %2222 = vmatpush1.bf16.msra.mxu0 %v2084
    %2223 = vmatprep.subr.bf16.mxu0 %v2087
    %2224 = vmatpush1.bf16.msra.mxu0 %v2086
    %2225 = vmatprep.subr.bf16.mxu0 %v2089
    %2226 = vmatpush1.bf16.msra.mxu0 %v2088
    %2227 = vmatprep.subr.bf16.mxu0 %v2091
    %2228 = vmatpush1.bf16.msra.mxu0 %v2090
    %2229 = vmatprep.subr.bf16.mxu0 %v2093
    %2230 = vmatpush1.bf16.msra.mxu0 %v2092
    %2231 = vmatprep.subr.bf16.mxu0 %v2095
    %2232 = vmatpush1.bf16.msra.mxu0 %v2094
    %2233 = vmatprep.subr.bf16.mxu0 %v2097
    %2234 = vmatpush1.bf16.msra.mxu0 %v2096
    %2235 = vmatprep.subr.bf16.mxu0 %v2099
    %2236 = vmatpush1.bf16.msra.mxu0 %v2098
    %2237 = vmatprep.subr.bf16.mxu0 %v2101
    %2238 = vmatpush1.bf16.msra.mxu0 %v2100
    %2239 = vmatprep.subr.bf16.mxu0 %v2103
    %2240 = vmatpush1.bf16.msra.mxu0 %v2102
    %2241 = vmatprep.subr.bf16.mxu0 %v2105
    %2242 = vmatpush1.bf16.msra.mxu0 %v2104
    %2243 = vmatprep.subr.bf16.mxu0 %v2107
    %2244 = vmatpush1.bf16.msra.mxu0 %v2106
    %2245 = vmatprep.subr.bf16.mxu0 %v2109
    %2246 = vmatpush1.bf16.msra.mxu0 %v2108
    %2247 = vmatprep.mubr.bf16.mxu0 %v1777
    %2248 = vmatmul.mubr.bf16.gmra.mrb[0].mxu0 %v1776
    %v2249 = vpop.f32.mrb[0].mxu0
    %v2250 = vadd.f32 %v2209, %v2249
    %v2251 = vpop.f32.mrb[0].mxu0
    %v2252 = vadd.f32 %v2211, %v2251
    %v2253 = vpop.f32.mrb[0].mxu0
    %v2254 = vpop.f32.mrb[0].mxu0
    %2255 = vdwg.mxu0
    %v2256 = vmul.f32 %v2250, 0.2
    %v2257 = vmul.f32 %v2252, 0.2
    %v2258 = vmax.f32 %v2250, %v2256
    %v2259 = vmax.f32 %v2252, %v2257
    %v2260 = vld [vmem:[%s5] sm:$0x3]
    %v2262 = vlaneseq
    %v2263 = vshrl.u32 %v2262, 7
    %v2264 = vsub.s32 0, %v2263
    %v2265 = vrot.slane %v2260, %v2264
    %v2266 = vlaneseq
    %v2267 = vshrl.u32 %v2266, 7
    %v2268 = vsub.s32 1, %v2267
    %v2269 = vrot.slane %v2260, %v2268
    %v2272 = vmul.f32 %v2258, %v2265
    %v2273 = vmul.f32 %v2259, %v2269
    %v2274 = vadd.f32 %v2272, %v2273
    %2275 = vadd.xlane.f32.xlu0 %v2274
    %v2276 = vpop.xlane.xlu0 %2275
    %v2277 = vld [vmem:[#allocation2] sm:$0x1]
    %v2279 = vlaneseq
    %v2280 = vshrl.u32 %v2279, 7
    %v2281 = vsub.s32 0, %v2280
    %v2282 = vrot.slane %v2277, %v2281
    %v2284 = vadd.f32 %v2276, %v2282
    %v2285 = vxor.u32 %v2284, 2147483648
    %v2286 = vmul.f32 %v2285, 1.442695
    %v2287 = vpow.pop %v2286
    %v2288 = vadd.f32 %v2287, 1.0
    %v2289 = vrcp.pop %v2288
    %v2290 = vmul.f32 1.0, %v2289
    %vm2291 = vcmask 7168
    %2292 = vst.msk [vmem:[%s7] sm:$0xff] %vm2291, %v2290
    // Predicated region
    $region34: #{discriminator_forward.1} parent=1 // pred_check
      _
    $region35: #{discriminator_forward.1} parent=1 // pred_check_branch
      %2294 = sbr.rel (0) target = $region37
    $region36: #{discriminator_forward.1} parent=1 // pred_region
      _
    $region37: #{discriminator_forward.1} parent=1 // pred_fallthru
      _
    // Predicated region
    $region38: #{discriminator_forward.1} parent=1 // pred_check
      _
    $region39: #{discriminator_forward.1} parent=1 // pred_check_branch
      %2296 = sbr.rel (0) target = $region41
    $region40: #{discriminator_forward.1} parent=1 // pred_region
      _
    $region41: #{discriminator_forward.1} parent=1 // pred_fallthru
      _
    %2297 = vsyncpa [#allocation4], 1

</llo_original>
